<compile_context>
chip_gen: v5e
topology: v5e:2x2
jax: 0.10.0
libtpu: 0.0.40
codegen_flags: <defaults>
</compile_context>

<pallas_src>
import functools

import jax
import jax.numpy as jnp
import numpy as np
from jax import lax
from jax.experimental import pallas as pl
from jax.experimental.pallas import tpu as pltpu


def _round_up(x, q):
    return -(-x // q) * q


def _pick_tile(n, pref, quantum):
    """Largest multiple of `quantum` dividing n that is <= pref, else n (full)."""
    t = (min(pref, n) // quantum) * quantum
    while t >= quantum:
        if n % t == 0:
            return t
        t -= quantum
    return n


def _pick_group(h, target_k):
    """Channels per group so the Wo matmul depth g*h ~= target_k, with g | h."""
    g = max(1, min(h, target_k // h))
    while h % g != 0:
        g -= 1
    return g


# ---------------------------------------------------------------------------
# Kernel 1: LayerNorm + mask + proj_a / proj_b
# ---------------------------------------------------------------------------
def _proj_kernel(m_ref, mask_ref, g_ref, beta_ref, wa_ref, wb_ref,
                 a_ref, b_ref, *, eps):
    x = m_ref[0].astype(jnp.float32)                         # (tr, C) f32
    mu = jnp.mean(x, axis=-1, keepdims=True)
    var = jnp.mean(jnp.square(x - mu), axis=-1, keepdims=True)
    xn = (x - mu) * lax.rsqrt(var + eps)
    xn = xn * g_ref[...] + beta_ref[...]                     # LN affine, f32
    xn = xn * mask_ref[0]                                    # 0/1 mask, per row
    xb = xn.astype(jnp.bfloat16)                             # MXU input

    # b in its natural (tr, H) layout -> reshapes to (B, S, N*H) for free.
    yb = jnp.dot(xb, wb_ref[...], preferred_element_type=jnp.float32)
    b_ref[0] = yb.astype(jnp.bfloat16)

    # a produced directly transposed: contract c_in of (H, C) with c_in of
    # (tr, C) -> (H, tr).  Lane-dense tr-wide store, no extra XLU transpose.
    ya_t = lax.dot_general(wa_ref[...], xb, (((1,), (1,)), ((), ())),
                           preferred_element_type=jnp.float32)
    a_ref[0] = ya_t.astype(jnp.bfloat16)


# ---------------------------------------------------------------------------
# Kernel 2: outer product accumulation + grouped proj_o
# ---------------------------------------------------------------------------
def _opm_kernel(a_ref, b_ref, wo_ref, out_ref, acc_ref, *, ti, tj, H, G, c_out):
    s_idx = pl.program_id(3)

    @pl.when(s_idx == 0)
    def _init():
        acc_ref[...] = jnp.zeros_like(acc_ref)

    b2 = b_ref[0]                                            # (ts, tj*H) bf16
    n_grp = H // G

    def group_body(g, carry):
        # stage 1: G per-channel outer-product matmuls (contract over S)
        parts = []
        for u in range(G):
            a_c = a_ref[0, g * G + u]                        # (ts, ti) bf16
            p_c = lax.dot_general(a_c, b2, (((0,), (0,)), ((), ())),
                                  preferred_element_type=jnp.float32)  # (ti, tj*H)
            # cast to bf16 BEFORE the lane->sublane re-tiling reshape
            parts.append(p_c.astype(jnp.bfloat16).reshape(ti * tj, H))
        p_grp = jnp.concatenate(parts, axis=1)               # (ti*tj, G*H)
        # stage 2: one full-depth (K = G*H) Wo matmul per group
        acc_ref[...] += jnp.dot(p_grp, wo_ref[g],
                                preferred_element_type=jnp.float32)
        return carry

    lax.fori_loop(0, n_grp, group_body, None)

    @pl.when(s_idx == pl.num_programs(3) - 1)
    def _finalize():
        out_ref[0] = acc_ref[...].reshape(ti, tj * c_out)    # lane-dense store


# ---------------------------------------------------------------------------
# Wrapper
# ---------------------------------------------------------------------------
def outer_product_mean(m, mask, params, *, tr=1024, ts_pref=512, group_k=256):
    B, S, N, C = m.shape
    H = params["proj_a"].shape[0]
    c_out = params["proj_o_w"].shape[0]
    eps = 1e-5

    # ----- pad N and S so every block is (sublane, lane) friendly -----------
    if N >= 128:
        Np = _round_up(N, 128)
        ti = tj = 128
    else:
        Np = _round_up(N, 8)
        ti = tj = Np
    ts = min(ts_pref, _round_up(S, 16))      # bf16 sublane quantum = 16
    Sp = _round_up(S, ts)

    if (Np != N) or (Sp != S):
        m = jnp.pad(m, ((0, 0), (0, Sp - S), (0, Np - N), (0, 0)))
        mask = jnp.pad(mask, ((0, 0), (0, Sp - S), (0, Np - N)))

    RB = Sp * Np                             # rows per batch (multiple of 128)
    tr_eff = _pick_tile(RB, tr, 128)

    # ------------------ kernel 1: LN + a/b projections ----------------------
    m2 = m.reshape(B, RB, C)                                 # source dtype kept
    mask2 = mask.reshape(B, RB, 1).astype(jnp.float32)
    gamma = params["ln_g"].reshape(1, C).astype(jnp.float32)
    beta = params["ln_b"].reshape(1, C).astype(jnp.float32)
    wa = params["proj_a"].astype(jnp.bfloat16)               # (H, C)
    wb = params["proj_b"].T.astype(jnp.bfloat16)             # (C, H)

    a_out, b_out = pl.pallas_call(
        functools.partial(_proj_kernel, eps=eps),
        out_shape=(jax.ShapeDtypeStruct((B, H, RB), jnp.bfloat16),
                   jax.ShapeDtypeStruct((B, RB, H), jnp.bfloat16)),
        grid=(B, RB // tr_eff),
        in_specs=[
            pl.BlockSpec((1, tr_eff, C), lambda b, r: (b, r, 0)),
            pl.BlockSpec((1, tr_eff, 1), lambda b, r: (b, r, 0)),
            pl.BlockSpec((1, C), lambda b, r: (0, 0)),
            pl.BlockSpec((1, C), lambda b, r: (0, 0)),
            pl.BlockSpec((H, C), lambda b, r: (0, 0)),
            pl.BlockSpec((C, H), lambda b, r: (0, 0)),
        ],
        out_specs=(pl.BlockSpec((1, H, tr_eff), lambda b, r: (b, 0, r)),
                   pl.BlockSpec((1, tr_eff, H), lambda b, r: (b, r, 0))),
        compiler_params=pltpu.CompilerParams(
            dimension_semantics=("parallel", "parallel")),
    )(m2, mask2, gamma, beta, wa, wb)

    a_t = a_out.reshape(B, H, Sp, Np)        # contiguous (free) reshapes
    b_flat = b_out.reshape(B, Sp, Np * H)

    # ------------------ kernel 2: outer product mean + proj_o ---------------
    G = _pick_group(H, group_k)              # channels per group (G*H ~ 256)
    n_grp = H // G
    # Wo laid as (group, (u, d), c_out) to match the concatenated P columns.
    wo_grp = (params["proj_o_w"].reshape(c_out, H, H).transpose(1, 2, 0)
              .reshape(n_grp, G * H, c_out).astype(jnp.bfloat16))

    # vmem_limit computed from the tile sizes (double-buffered blocks + acc
    # scratch + in-kernel temporaries + slack), floored at a safe 32 MiB.
    a_blk = H * ts * ti * 2
    b_blk = ts * tj * H * 2
    out_blk = ti * tj * c_out * 4
    wo_blk = n_grp * G * H * c_out * 2
    acc_bytes = ti * tj * c_out * 4
    temp_bytes = ti * tj * H * (4 + 4 * G)
    vmem_limit = int(min(max(2 * (a_blk + b_blk + out_blk + wo_blk)
                             + acc_bytes + temp_bytes + (8 << 20),
                             32 << 20),
                         120 << 20))

    out_flat = pl.pallas_call(
        functools.partial(_opm_kernel, ti=ti, tj=tj, H=H, G=G, c_out=c_out),
        out_shape=jax.ShapeDtypeStruct((B, Np, Np * c_out), jnp.float32),
        grid_spec=pltpu.PrefetchScalarGridSpec(
            num_scalar_prefetch=0,
            grid=(B, Np // ti, Np // tj, Sp // ts),
            in_specs=[
                pl.BlockSpec((1, H, ts, ti),
                             lambda bb, ii, jj, ss: (bb, 0, ss, ii)),
                pl.BlockSpec((1, ts, tj * H),
                             lambda bb, ii, jj, ss: (bb, ss, jj)),
                pl.BlockSpec((n_grp, G * H, c_out),
                             lambda bb, ii, jj, ss: (0, 0, 0)),
            ],
            out_specs=pl.BlockSpec((1, ti, tj * c_out),
                                   lambda bb, ii, jj, ss: (bb, ii, jj)),
            scratch_shapes=[pltpu.VMEM((ti * tj, c_out), jnp.float32)],
        ),
        compiler_params=pltpu.CompilerParams(
            dimension_semantics=("parallel", "parallel", "parallel",
                                 "arbitrary"),
            vmem_limit_bytes=vmem_limit),
    )(a_t, b_flat, wo_grp)

    # --------- XLA epilogue: 1/num scale + bias, fused with final reshape ---
    maskf = mask.astype(jnp.float32)
    num = jnp.einsum("bsi,bsj->bij", maskf, maskf)           # (B, Np, Np)
    inv_num = 1.0 / jnp.maximum(num, 1.0)
    bias = params["proj_o_b"].astype(jnp.float32)

    # TODO(synk): for v7x, a bf16 kernel-2 output would halve the out
    # double-buffer and the HBM writeback; kept f32 here for accuracy margin.
    out = out_flat.reshape(B, Np, Np, c_out)[:, :N, :N]
    out = out * inv_num[:, :N, :N, None] + bias
    return out


# TODO(synk): the optional `chunk_size` inference path of the PyTorch module is
# a pure memory optimization with identical math; only the non-chunked forward
# is implemented here.
def reference(m, mask, params):
    """Pure-JAX f32 reference matching the PyTorch forward (non-chunked path)."""
    maskf = mask[..., None]
    mu = m.mean(-1, keepdims=True)
    var = ((m - mu) ** 2).mean(-1, keepdims=True)
    mn = (m - mu) / jnp.sqrt(var + 1e-5) * params["ln_g"] + params["ln_b"]
    a = (mn @ params["proj_a"].T) * maskf
    b = (mn @ params["proj_b"].T) * maskf
    num = jnp.einsum("bsi,bsj->bij", mask, mask)
    num = jnp.maximum(num, 1.0)[..., None]
    B, S, N, H = a.shape
    z = jnp.einsum("bsic,bsjd->bijcd", a, b).reshape(B, N, N, H * H)
    z = z / num
    return z @ params["proj_o_w"].T + params["proj_o_b"]


if __name__ == "__main__":
    B, S, N = 2, 8, 16
    c_in, c_hidden, c_out = 32, 32, 16   # c_hidden=32 exercises the group loop

    key = jax.random.PRNGKey(0)
    k1, k2, k3, k4, k5, k6, k7, k8 = jax.random.split(key, 8)

    m = jax.random.normal(k1, (B, S, N, c_in), dtype=jnp.float32)
    mask = (jax.random.uniform(k2, (B, S, N)) > 0.3).astype(jnp.float32)

    # NOTE: the original module applies final_init_ (zeros) to proj_o; small
    # non-zero values are used here so the test exercises the full path.
    params = {
        "ln_g": 1.0 + 0.1 * jax.random.normal(k7, (c_in,), jnp.float32),
        "ln_b": 0.1 * jax.random.normal(k8, (c_in,), jnp.float32),
        "proj_a": 0.1 * jax.random.normal(k3, (c_hidden, c_in), jnp.float32),
        "proj_b": 0.1 * jax.random.normal(k4, (c_hidden, c_in), jnp.float32),
        "proj_o_w": 0.1 * jax.random.normal(k5, (c_out, c_hidden * c_hidden),
                                            jnp.float32),
        "proj_o_b": 0.1 * jax.random.normal(k6, (c_out,), jnp.float32),
    }

    out = jax.block_until_ready(outer_product_mean(m, mask, params))
    ref = jax.block_until_ready(reference(m, mask, params))

    # bf16 MXU inputs (f32 accumulation) -> loosened tolerance vs f32 reference.
    np.testing.assert_allclose(np.asarray(out), np.asarray(ref),
                               rtol=3e-2, atol=3e-2)
    print("KERNEL_OK")
</pallas_src>

<mosaic_0001>
module attributes {stable_mosaic.version = 11 : i64} {
  func.func @_proj_kernel(%arg0: i32, %arg1: i32, %arg2: memref<1x256x32xf32, #tpu.memory_space<vmem>>, %arg3: memref<1x256x1xf32, #tpu.memory_space<vmem>>, %arg4: memref<1x32xf32, #tpu.memory_space<vmem>>, %arg5: memref<1x32xf32, #tpu.memory_space<vmem>>, %arg6: memref<32x32xbf16, #tpu.memory_space<vmem>>, %arg7: memref<32x32xbf16, #tpu.memory_space<vmem>>, %arg8: memref<1x32x256xbf16, #tpu.memory_space<vmem>>, %arg9: memref<1x256x32xbf16, #tpu.memory_space<vmem>>) attributes {dimension_semantics = [#tpu.dimension_semantics<parallel>, #tpu.dimension_semantics<parallel>], iteration_bounds = array<i64: 2, 1>, scalar_prefetch = 0 : i64, scratch_operands = 0 : i64, tpu.core_type = #tpu.core_type<tc>, window_params = [{transform_indices = @transform_0, window_bounds = array<i64: 1, 256, 32>}, {transform_indices = @transform_1, window_bounds = array<i64: 1, 256, 1>}, {pipeline_mode = #tpu.pipeline_mode<synchronous>, transform_indices = @transform_2, window_bounds = array<i64: 1, 32>}, {pipeline_mode = #tpu.pipeline_mode<synchronous>, transform_indices = @transform_3, window_bounds = array<i64: 1, 32>}, {pipeline_mode = #tpu.pipeline_mode<synchronous>, transform_indices = @transform_4, window_bounds = array<i64: 32, 32>}, {pipeline_mode = #tpu.pipeline_mode<synchronous>, transform_indices = @transform_5, window_bounds = array<i64: 32, 32>}, {transform_indices = @transform_6, window_bounds = array<i64: 1, 32, 256>}, {transform_indices = @transform_7, window_bounds = array<i64: 1, 256, 32>}]} {
    %c0 = arith.constant 0 : index
    %c0_0 = arith.constant 0 : index
    %c0_1 = arith.constant 0 : index
    %0 = vector.load %arg2[%c0, %c0_0, %c0_1] : memref<1x256x32xf32, #tpu.memory_space<vmem>>, vector<1x256x32xf32>
    %1 = vector.shape_cast %0 : vector<1x256x32xf32> to vector<256x32xf32>
    %cst = arith.constant dense<0.000000e+00> : vector<256xf32>
    %2 = vector.multi_reduction <add>, %1, %cst [1] : vector<256x32xf32> to vector<256xf32>
    %3 = vector.shape_cast %2 : vector<256xf32> to vector<256x1xf32>
    %cst_2 = arith.constant 3.200000e+01 : f32
    %4 = vector.broadcast %cst_2 : f32 to vector<256x1xf32>
    %5 = arith.divf %3, %4 : vector<256x1xf32>
    %6 = vector.broadcast %5 : vector<256x1xf32> to vector<256x32xf32>
    %7 = arith.subf %1, %6 : vector<256x32xf32>
    %8 = arith.mulf %7, %7 : vector<256x32xf32>
    %cst_3 = arith.constant dense<0.000000e+00> : vector<256xf32>
    %9 = vector.multi_reduction <add>, %8, %cst_3 [1] : vector<256x32xf32> to vector<256xf32>
    %10 = vector.shape_cast %9 : vector<256xf32> to vector<256x1xf32>
    %cst_4 = arith.constant 3.200000e+01 : f32
    %11 = vector.broadcast %cst_4 : f32 to vector<256x1xf32>
    %12 = arith.divf %10, %11 : vector<256x1xf32>
    %13 = vector.broadcast %5 : vector<256x1xf32> to vector<256x32xf32>
    %14 = arith.subf %1, %13 : vector<256x32xf32>
    %cst_5 = arith.constant 9.99999974E-6 : f32
    %15 = vector.broadcast %cst_5 : f32 to vector<256x1xf32>
    %16 = arith.addf %12, %15 : vector<256x1xf32>
    %17 = math.rsqrt %16 : vector<256x1xf32>
    %18 = vector.broadcast %17 : vector<256x1xf32> to vector<256x32xf32>
    %19 = arith.mulf %14, %18 : vector<256x32xf32>
    %c0_6 = arith.constant 0 : index
    %c0_7 = arith.constant 0 : index
    %20 = vector.load %arg4[%c0_6, %c0_7] : memref<1x32xf32, #tpu.memory_space<vmem>>, vector<1x32xf32>
    %21 = vector.broadcast %20 : vector<1x32xf32> to vector<256x32xf32>
    %22 = arith.mulf %19, %21 : vector<256x32xf32>
    %c0_8 = arith.constant 0 : index
    %c0_9 = arith.constant 0 : index
    %23 = vector.load %arg5[%c0_8, %c0_9] : memref<1x32xf32, #tpu.memory_space<vmem>>, vector<1x32xf32>
    %24 = vector.broadcast %23 : vector<1x32xf32> to vector<256x32xf32>
    %25 = arith.addf %22, %24 : vector<256x32xf32>
    %c0_10 = arith.constant 0 : index
    %c0_11 = arith.constant 0 : index
    %c0_12 = arith.constant 0 : index
    %26 = vector.load %arg3[%c0_10, %c0_11, %c0_12] : memref<1x256x1xf32, #tpu.memory_space<vmem>>, vector<1x256x1xf32>
    %27 = vector.shape_cast %26 : vector<1x256x1xf32> to vector<256x1xf32>
    %28 = vector.broadcast %27 : vector<256x1xf32> to vector<256x32xf32>
    %29 = arith.mulf %25, %28 : vector<256x32xf32>
    %30 = arith.truncf %29 : vector<256x32xf32> to vector<256x32xbf16>
    %c0_13 = arith.constant 0 : index
    %c0_14 = arith.constant 0 : index
    %31 = vector.load %arg7[%c0_13, %c0_14] : memref<32x32xbf16, #tpu.memory_space<vmem>>, vector<32x32xbf16>
    %cst_15 = arith.constant dense<0.000000e+00> : vector<256x32xf32>
    %32 = tpu.matmul %30, %31, %cst_15 {dimension_numbers = #tpu.dot_dimension_numbers<[1], [0], [0], [1], [0, 0, 1, 1], [], []>} : vector<256x32xbf16>, vector<32x32xbf16>, vector<256x32xf32> -> vector<256x32xf32>
    %33 = arith.truncf %32 : vector<256x32xf32> to vector<256x32xbf16>
    %c0_16 = arith.constant 0 : index
    %c0_17 = arith.constant 0 : index
    %c0_18 = arith.constant 0 : index
    %34 = vector.load %arg9[%c0_16, %c0_17, %c0_18] : memref<1x256x32xbf16, #tpu.memory_space<vmem>>, vector<1x256x32xbf16>
    %35 = vector.shape_cast %34 : vector<1x256x32xbf16> to vector<256x32xbf16>
    %36 = vector.shape_cast %33 : vector<256x32xbf16> to vector<1x256x32xbf16>
    tpu.vector_store %arg9[%c0_16, %c0_17, %c0_18], %36 {strides = array<i32>} : memref<1x256x32xbf16, #tpu.memory_space<vmem>>, vector<1x256x32xbf16>,
    %c0_19 = arith.constant 0 : index
    %c0_20 = arith.constant 0 : index
    %37 = vector.load %arg6[%c0_19, %c0_20] : memref<32x32xbf16, #tpu.memory_space<vmem>>, vector<32x32xbf16>
    %cst_21 = arith.constant dense<0.000000e+00> : vector<32x256xf32>
    %38 = tpu.matmul %37, %30, %cst_21 {dimension_numbers = #tpu.dot_dimension_numbers<[1], [1], [0], [0], [0, 0, 1, 0], [], []>} : vector<32x32xbf16>, vector<256x32xbf16>, vector<32x256xf32> -> vector<32x256xf32>
    %39 = arith.truncf %38 : vector<32x256xf32> to vector<32x256xbf16>
    %c0_22 = arith.constant 0 : index
    %c0_23 = arith.constant 0 : index
    %c0_24 = arith.constant 0 : index
    %40 = vector.load %arg8[%c0_22, %c0_23, %c0_24] : memref<1x32x256xbf16, #tpu.memory_space<vmem>>, vector<1x32x256xbf16>
    %41 = vector.shape_cast %40 : vector<1x32x256xbf16> to vector<32x256xbf16>
    %42 = vector.shape_cast %39 : vector<32x256xbf16> to vector<1x32x256xbf16>
    tpu.vector_store %arg8[%c0_22, %c0_23, %c0_24], %42 {strides = array<i32>} : memref<1x32x256xbf16, #tpu.memory_space<vmem>>, vector<1x32x256xbf16>,
    return
  }
  func.func @transform_0(%arg0: i32, %arg1: i32) -> (i32, i32, i32) {
    %c0_i32 = arith.constant 0 : i32
    %c0_i32_0 = arith.constant 0 : i32
    return %arg0, %arg1, %c0_i32 : i32, i32, i32
  }
  func.func @transform_1(%arg0: i32, %arg1: i32) -> (i32, i32, i32) {
    %c0_i32 = arith.constant 0 : i32
    %c0_i32_0 = arith.constant 0 : i32
    return %arg0, %arg1, %c0_i32 : i32, i32, i32
  }
  func.func @transform_2(%arg0: i32, %arg1: i32) -> (i32, i32) {
    %c0_i32 = arith.constant 0 : i32
    %c0_i32_0 = arith.constant 0 : i32
    %c0_i32_1 = arith.constant 0 : i32
    return %c0_i32, %c0_i32_0 : i32, i32
  }
  func.func @transform_3(%arg0: i32, %arg1: i32) -> (i32, i32) {
    %c0_i32 = arith.constant 0 : i32
    %c0_i32_0 = arith.constant 0 : i32
    %c0_i32_1 = arith.constant 0 : i32
    return %c0_i32, %c0_i32_0 : i32, i32
  }
  func.func @transform_4(%arg0: i32, %arg1: i32) -> (i32, i32) {
    %c0_i32 = arith.constant 0 : i32
    %c0_i32_0 = arith.constant 0 : i32
    %c0_i32_1 = arith.constant 0 : i32
    return %c0_i32, %c0_i32_0 : i32, i32
  }
  func.func @transform_5(%arg0: i32, %arg1: i32) -> (i32, i32) {
    %c0_i32 = arith.constant 0 : i32
    %c0_i32_0 = arith.constant 0 : i32
    %c0_i32_1 = arith.constant 0 : i32
    return %c0_i32, %c0_i32_0 : i32, i32
  }
  func.func @transform_6(%arg0: i32, %arg1: i32) -> (i32, i32, i32) {
    %c0_i32 = arith.constant 0 : i32
    %c0_i32_0 = arith.constant 0 : i32
    return %arg0, %c0_i32, %arg1 : i32, i32, i32
  }
  func.func @transform_7(%arg0: i32, %arg1: i32) -> (i32, i32, i32) {
    %c0_i32 = arith.constant 0 : i32
    %c0_i32_0 = arith.constant 0 : i32
    return %arg0, %arg1, %c0_i32 : i32, i32, i32
  }
}

</mosaic_0001>

<llo_original>
// kernel: tpu_custom_call.1
$region0: #{tpu_custom_call.1}
  #allocation0 [shape = 'u32[]', space=smem, size = 0x4, offset = 0x4, fixed_abs, tag = 'smem constant byte address 0x4 - core index']
  #allocation1 [shape = 'u32[72,128]{1,0:T(1,128)}', space=vmem, size = 0x9000, scoped, tag = 'internal scratch']
  %s0 = inlined_call_operand.vmem [shape: f32[2,256,32], index: 0, kind: input, shape index: {}]
  %s1 = inlined_call_operand.vmem [shape: f32[2,256,1], index: 1, kind: input, shape index: {}]
  %s2 = inlined_call_operand.vmem [shape: f32[1,32], index: 2, kind: input, shape index: {}]
  %s3 = inlined_call_operand.vmem [shape: f32[1,32], index: 3, kind: input, shape index: {}]
  %s4 = inlined_call_operand.vmem [shape: bf16[32,32], index: 4, kind: input, shape index: {}]
  %s5 = inlined_call_operand.vmem [shape: bf16[32,32], index: 5, kind: input, shape index: {}]
  %s6 = inlined_call_operand.hbm [shape: bf16[2,32,256], index: 6, kind: output, shape index: {0}]
  %s7 = inlined_call_operand.vmem [shape: bf16[2,256,32], index: 7, kind: output, shape index: {1}]
  %8 = xla_tuple %s6, %s7
  %s9 = sld [smem:[#allocation0]]
  $region65: #{tpu_custom_call.1} parent=0
    _
  %s11 = ssub.s32 1, %s9
  %s12 = scalar_select 0, %s11, %s9
  $region1: #{tpu_custom_call.1} parent=0
    #allocation2 [shape = 'u8[32768]{0}', space=vmem, size = 0x8000, scoped, tag = 'output window, operand 0']
    #allocation3 [shape = 's32[2]{0}', space=sflag, size = 0x8, scoped, tag = 'scoped memory for tpu_custom_call.1']
    %13 = vsyncpa [#allocation3], 0
    %s14 = scalar_lea.sflag [#allocation3], 1
    %15 = vsyncpa %s14, 0
    loop: start=0, step=1, limit=4
    $region2: #{tpu_custom_call.1} parent=1 // loop_pre_header
      _
    $region3: #{tpu_custom_call.1} parent=1 // loop_header
      %s17 = sphi 0, %s21
      %p18 = scmp.ge.s32.totalorder %s17, 4
      %s24 = sphi 0, %s36
      %s25 = sphi 0, %s32
      %s26 = sphi 0, %s24
      %s27 = sphi 0, %s25
      %s28 = sphi 0, %s26
      %s29 = sphi 0, %s27
      %s41 = sphi 0, %s43
      %s44 = sphi 0, %s41
      %s45 = sphi 0, %s44
      %s61 = sphi 0, %s45
      %s69 = sphi 0, %s71
      %s72 = sphi 0, %s69
      %s73 = sphi 0, %s72
      %s89 = sphi 0, %s73
      %s93 = sphi 0, %s93
      %s95 = sphi 0, %s93
      %s96 = sphi 0, %s95
      %s110 = sphi 0, %s96
      %s114 = sphi 0, %s114
      %s116 = sphi 0, %s114
      %s117 = sphi 0, %s116
      %s131 = sphi 0, %s117
      %s135 = sphi 0, %s135
      %s137 = sphi 0, %s135
      %s138 = sphi 0, %s137
      %s152 = sphi 0, %s138
      %s156 = sphi 0, %s156
      %s158 = sphi 0, %s156
      %s159 = sphi 0, %s158
      %s173 = sphi 0, %s159
      %s181 = sphi 0, %s183
      %s184 = sphi 0, %s181
      %s185 = sphi 0, %s184
      %s201 = sphi 0, %s185
      %s209 = sphi 0, %s211
      %s212 = sphi 0, %s209
      %s213 = sphi 0, %s212
      %s229 = sphi 0, %s213
    $region4: #{tpu_custom_call.1} parent=1 // loop_header_branch
      %20 = sbr.rel (%p18) target = $region8
    $region5: #{tpu_custom_call.1} parent=1 // loop_body
      %s22 = ssub.s32 %s17, 1
      %s23 = ssub.s32 %s17, 2
      %s30 = sadd.s32 1, %s25
      %p31 = scmp.ge.s32.totalorder %s30, 1
      %s32 = scalar_select %p31, 0, %s30
      %s33 = sadd.s32 1, %s24
      %s34 = scalar_select %p31, %s33, %s24
      %p35 = scmp.ge.s32.totalorder %s34, 2
      %s36 = scalar_select %p35, 0, %s34
      %s37 = ssub.s32 %s24, %s36
      %s38 = ssub.s32 %s25, %s32
      %s39 = sor.u32 %s37, %s38
      %p40 = scmp.eq.s32.totalorder %s39, 0
      %s42 = sadd.s32 %s41, 1
      %s43 = scalar_select %p40, %s41, %s42
      %p46 = pneg %p40
      %p47 = scmp.eq.s32.totalorder %s17, 1
      %p48 = por %p46, %p47
      %p49 = scmp.ne.s32.totalorder %s41, %s44
      %p50 = scmp.eq.s32.totalorder %s17, 0
      %p51 = por %p49, %p50
      %p52 = scmp.ne.s32.totalorder %s41, %s44
      %p53 = scmp.eq.s32.totalorder %s22, 1
      %p54 = por %p52, %p53
      %p55 = scmp.ne.s32.totalorder %s44, %s45
      %p56 = scmp.eq.s32.totalorder %s22, 0
      %p57 = por %p55, %p56
      %p58 = scmp.ne.s32.totalorder %s44, %s45
      %p59 = scmp.eq.s32.totalorder %s23, 1
      %p60 = por %p58, %p59
      %p62 = scmp.ne.s32.totalorder %s45, %s61
      %p63 = scmp.eq.s32.totalorder %s23, 0
      %p64 = por %p62, %p63
      %s65 = ssub.s32 %s24, %s36
      %s66 = ssub.s32 %s25, %s32
      %s67 = sor.u32 %s65, %s66
      %p68 = scmp.eq.s32.totalorder %s67, 0
      %s70 = sadd.s32 %s69, 1
      %s71 = scalar_select %p68, %s69, %s70
      %p74 = pneg %p68
      %p75 = scmp.eq.s32.totalorder %s17, 1
      %p76 = por %p74, %p75
      %p77 = scmp.ne.s32.totalorder %s69, %s72
      %p78 = scmp.eq.s32.totalorder %s17, 0
      %p79 = por %p77, %p78
      %p80 = scmp.ne.s32.totalorder %s69, %s72
      %p81 = scmp.eq.s32.totalorder %s22, 1
      %p82 = por %p80, %p81
      %p83 = scmp.ne.s32.totalorder %s72, %s73
      %p84 = scmp.eq.s32.totalorder %s22, 0
      %p85 = por %p83, %p84
      %p86 = scmp.ne.s32.totalorder %s72, %s73
      %p87 = scmp.eq.s32.totalorder %s23, 1
      %p88 = por %p86, %p87
      %p90 = scmp.ne.s32.totalorder %s73, %s89
      %p91 = scmp.eq.s32.totalorder %s23, 0
      %p92 = por %p90, %p91
      %s94 = sadd.s32 %s93, 1
      %p97 = scmp.eq.s32.totalorder %s17, 1
      %p98 = scmp.ne.s32.totalorder %s93, %s95
      %p99 = scmp.eq.s32.totalorder %s17, 0
      %p100 = por %p98, %p99
      %p101 = scmp.ne.s32.totalorder %s93, %s95
      %p102 = scmp.eq.s32.totalorder %s22, 1
      %p103 = por %p101, %p102
      %p104 = scmp.ne.s32.totalorder %s95, %s96
      %p105 = scmp.eq.s32.totalorder %s22, 0
      %p106 = por %p104, %p105
      %p107 = scmp.ne.s32.totalorder %s95, %s96
      %p108 = scmp.eq.s32.totalorder %s23, 1
      %p109 = por %p107, %p108
      %p111 = scmp.ne.s32.totalorder %s96, %s110
      %p112 = scmp.eq.s32.totalorder %s23, 0
      %p113 = por %p111, %p112
      %s115 = sadd.s32 %s114, 1
      %p118 = scmp.eq.s32.totalorder %s17, 1
      %p119 = scmp.ne.s32.totalorder %s114, %s116
      %p120 = scmp.eq.s32.totalorder %s17, 0
      %p121 = por %p119, %p120
      %p122 = scmp.ne.s32.totalorder %s114, %s116
      %p123 = scmp.eq.s32.totalorder %s22, 1
      %p124 = por %p122, %p123
      %p125 = scmp.ne.s32.totalorder %s116, %s117
      %p126 = scmp.eq.s32.totalorder %s22, 0
      %p127 = por %p125, %p126
      %p128 = scmp.ne.s32.totalorder %s116, %s117
      %p129 = scmp.eq.s32.totalorder %s23, 1
      %p130 = por %p128, %p129
      %p132 = scmp.ne.s32.totalorder %s117, %s131
      %p133 = scmp.eq.s32.totalorder %s23, 0
      %p134 = por %p132, %p133
      %s136 = sadd.s32 %s135, 1
      %p139 = scmp.eq.s32.totalorder %s17, 1
      %p140 = scmp.ne.s32.totalorder %s135, %s137
      %p141 = scmp.eq.s32.totalorder %s17, 0
      %p142 = por %p140, %p141
      %p143 = scmp.ne.s32.totalorder %s135, %s137
      %p144 = scmp.eq.s32.totalorder %s22, 1
      %p145 = por %p143, %p144
      %p146 = scmp.ne.s32.totalorder %s137, %s138
      %p147 = scmp.eq.s32.totalorder %s22, 0
      %p148 = por %p146, %p147
      %p149 = scmp.ne.s32.totalorder %s137, %s138
      %p150 = scmp.eq.s32.totalorder %s23, 1
      %p151 = por %p149, %p150
      %p153 = scmp.ne.s32.totalorder %s138, %s152
      %p154 = scmp.eq.s32.totalorder %s23, 0
      %p155 = por %p153, %p154
      %s157 = sadd.s32 %s156, 1
      %p160 = scmp.eq.s32.totalorder %s17, 1
      %p161 = scmp.ne.s32.totalorder %s156, %s158
      %p162 = scmp.eq.s32.totalorder %s17, 0
      %p163 = por %p161, %p162
      %p164 = scmp.ne.s32.totalorder %s156, %s158
      %p165 = scmp.eq.s32.totalorder %s22, 1
      %p166 = por %p164, %p165
      %p167 = scmp.ne.s32.totalorder %s158, %s159
      %p168 = scmp.eq.s32.totalorder %s22, 0
      %p169 = por %p167, %p168
      %p170 = scmp.ne.s32.totalorder %s158, %s159
      %p171 = scmp.eq.s32.totalorder %s23, 1
      %p172 = por %p170, %p171
      %p174 = scmp.ne.s32.totalorder %s159, %s173
      %p175 = scmp.eq.s32.totalorder %s23, 0
      %p176 = por %p174, %p175
      %s177 = ssub.s32 %s24, %s36
      %s178 = ssub.s32 %s25, %s32
      %s179 = sor.u32 %s177, %s178
      %p180 = scmp.eq.s32.totalorder %s179, 0
      %s182 = sadd.s32 %s181, 1
      %s183 = scalar_select %p180, %s181, %s182
      %p186 = pneg %p180
      %p187 = scmp.eq.s32.totalorder %s17, 1
      %p188 = por %p186, %p187
      %p189 = scmp.ne.s32.totalorder %s181, %s184
      %p190 = scmp.eq.s32.totalorder %s17, 0
      %p191 = por %p189, %p190
      %p192 = scmp.ne.s32.totalorder %s181, %s184
      %p193 = scmp.eq.s32.totalorder %s22, 1
      %p194 = por %p192, %p193
      %p195 = scmp.ne.s32.totalorder %s184, %s185
      %p196 = scmp.eq.s32.totalorder %s22, 0
      %p197 = por %p195, %p196
      %p198 = scmp.ne.s32.totalorder %s184, %s185
      %p199 = scmp.eq.s32.totalorder %s23, 1
      %p200 = por %p198, %p199
      %p202 = scmp.ne.s32.totalorder %s185, %s201
      %p203 = scmp.eq.s32.totalorder %s23, 0
      %p204 = por %p202, %p203
      %s205 = ssub.s32 %s24, %s36
      %s206 = ssub.s32 %s25, %s32
      %s207 = sor.u32 %s205, %s206
      %p208 = scmp.eq.s32.totalorder %s207, 0
      %s210 = sadd.s32 %s209, 1
      %s211 = scalar_select %p208, %s209, %s210
      %p214 = pneg %p208
      %p215 = scmp.eq.s32.totalorder %s17, 1
      %p216 = por %p214, %p215
      %p217 = scmp.ne.s32.totalorder %s209, %s212
      %p218 = scmp.eq.s32.totalorder %s17, 0
      %p219 = por %p217, %p218
      %p220 = scmp.ne.s32.totalorder %s209, %s212
      %p221 = scmp.eq.s32.totalorder %s22, 1
      %p222 = por %p220, %p221
      %p223 = scmp.ne.s32.totalorder %s212, %s213
      %p224 = scmp.eq.s32.totalorder %s22, 0
      %p225 = por %p223, %p224
      %p226 = scmp.ne.s32.totalorder %s212, %s213
      %p227 = scmp.eq.s32.totalorder %s23, 1
      %p228 = por %p226, %p227
      %p230 = scmp.ne.s32.totalorder %s213, %s229
      %p231 = scmp.eq.s32.totalorder %s23, 0
      %p232 = por %p230, %p231
      %p233 = scmp.le.s32.totalorder 1, %s17
      %p234 = scmp.lt.s32.totalorder %s17, 3
      %p235 = pnand %p233, %p234
      %p236 = pneg %p235
      // Predicated region
      $region9: #{tpu_custom_call.1} parent=5 // pred_check
        _
      $region10: #{tpu_custom_call.1} parent=5 // pred_check_branch
        %238 = sbr.rel (%p235) target = $region12
      $region11: #{tpu_custom_call.1} parent=5 // pred_region
        %s239 = ssub.s32 %s17, 1
        // Predicated region
        $region13: #{tpu_custom_call.1} parent=11 // pred_check
          %p240 = pneg %p106
        $region14: #{tpu_custom_call.1} parent=11 // pred_check_branch
          %242 = sbr.rel (%p240) target = $region16
        $region15: #{tpu_custom_call.1} parent=11 // pred_region
          _
        $region16: #{tpu_custom_call.1} parent=11 // pred_fallthru
          _
        // Predicated region
        $region17: #{tpu_custom_call.1} parent=11 // pred_check
          %p243 = pneg %p127
        $region18: #{tpu_custom_call.1} parent=11 // pred_check_branch
          %245 = sbr.rel (%p243) target = $region20
        $region19: #{tpu_custom_call.1} parent=11 // pred_region
          _
        $region20: #{tpu_custom_call.1} parent=11 // pred_fallthru
          _
        // Predicated region
        $region21: #{tpu_custom_call.1} parent=11 // pred_check
          %p246 = pneg %p148
        $region22: #{tpu_custom_call.1} parent=11 // pred_check_branch
          %248 = sbr.rel (%p246) target = $region24
        $region23: #{tpu_custom_call.1} parent=11 // pred_region
          _
        $region24: #{tpu_custom_call.1} parent=11 // pred_fallthru
          _
        // Predicated region
        $region25: #{tpu_custom_call.1} parent=11 // pred_check
          %p249 = pneg %p169
        $region26: #{tpu_custom_call.1} parent=11 // pred_check_branch
          %251 = sbr.rel (%p249) target = $region28
        $region27: #{tpu_custom_call.1} parent=11 // pred_region
          _
        $region28: #{tpu_custom_call.1} parent=11 // pred_fallthru
          _
      $region12: #{tpu_custom_call.1} parent=5 // pred_fallthru
        _
      %p252 = scmp.lt.s32.totalorder %s17, 2
      // Predicated region
      $region29: #{tpu_custom_call.1} parent=5 // pred_check
        %p253 = pneg %p252
      $region30: #{tpu_custom_call.1} parent=5 // pred_check_branch
        %255 = sbr.rel (%p253) target = $region32
      $region31: #{tpu_custom_call.1} parent=5 // pred_region
        // Predicated region
        $region33: #{tpu_custom_call.1} parent=31 // pred_check
          %p256 = pneg %p51
        $region34: #{tpu_custom_call.1} parent=31 // pred_check_branch
          %258 = sbr.rel (%p256) target = $region36
        $region35: #{tpu_custom_call.1} parent=31 // pred_region
          %s259 = smul.u32 32, %s25
          %p260 = scmp.lt.s32.totalorder %s24, 1
          %s261 = scalar_select %p260, %s24, 1
          %p262 = scmp.lt.s32.totalorder %s259, 31
          %s263 = scalar_select %p262, %s259, 31
          %s264 = smul.addr %s261, 32
          %s265 = sadd.s32 %s263, %s264
          %s266 = smul.addr %s265, 8
          %s267 = scalar_lea.vmem %s0, %s266
          %s268 = smul.u32 32, %s25
        $region36: #{tpu_custom_call.1} parent=31 // pred_fallthru
          _
        // Predicated region
        $region37: #{tpu_custom_call.1} parent=31 // pred_check
          %p269 = pneg %p79
        $region38: #{tpu_custom_call.1} parent=31 // pred_check_branch
          %271 = sbr.rel (%p269) target = $region40
        $region39: #{tpu_custom_call.1} parent=31 // pred_region
          %s272 = smul.u32 32, %s25
          %p273 = scmp.lt.s32.totalorder %s24, 1
          %s274 = scalar_select %p273, %s24, 1
          %p275 = scmp.lt.s32.totalorder %s272, 31
          %s276 = scalar_select %p275, %s272, 31
          %s277 = smul.addr %s274, 32
          %s278 = sadd.s32 %s276, %s277
          %s279 = smul.addr %s278, 8
          %s280 = scalar_lea.vmem %s1, %s279
          %s281 = smul.u32 32, %s25
        $region40: #{tpu_custom_call.1} parent=31 // pred_fallthru
          _
      $region32: #{tpu_custom_call.1} parent=5 // pred_fallthru
        _
      %p282 = scmp.le.s32.totalorder 1, %s17
      %p283 = scmp.lt.s32.totalorder %s17, 3
      %p284 = pnand %p282, %p283
      %p285 = pneg %p284
      // Predicated region
      $region41: #{tpu_custom_call.1} parent=5 // pred_check
        _
      $region42: #{tpu_custom_call.1} parent=5 // pred_check_branch
        %287 = sbr.rel (%p284) target = $region44
      $region43: #{tpu_custom_call.1} parent=5 // pred_region
        %s288 = ssub.s32 %s17, 1
        %s289 = smul.u32 32, %s27
        %p290 = scmp.lt.s32.totalorder %s26, 1
        %s291 = scalar_select %p290, %s26, 1
        %p292 = scmp.lt.s32.totalorder %s289, 31
        %s293 = scalar_select %p292, %s289, 31
        %s294 = smul.addr %s291, 32
        %s295 = sadd.s32 %s293, %s294
        %s296 = smul.addr %s295, 8
        %s297 = scalar_lea.vmem %s0, %s296
        %p298 = pneg %p57
        %p299 = pneg %p54
        %s300 = smul.u32 32, %s27
        %p301 = scmp.lt.s32.totalorder %s26, 1
        %s302 = scalar_select %p301, %s26, 1
        %p303 = scmp.lt.s32.totalorder %s300, 31
        %s304 = scalar_select %p303, %s300, 31
        %s305 = smul.addr %s302, 32
        %s306 = sadd.s32 %s304, %s305
        %s307 = smul.addr %s306, 8
        %s308 = scalar_lea.vmem %s1, %s307
        %p309 = pneg %p85
        %p310 = pneg %p82
        %p311 = pneg %p106
        %p312 = pneg %p103
        %p313 = pneg %p127
        %p314 = pneg %p124
        %p315 = pneg %p148
        %p316 = pneg %p145
        %p317 = pneg %p169
        %p318 = pneg %p166
        %p319 = pneg %p197
        %p320 = pneg %p194
        %s321 = sand.u32 %s184, 1
        %s322 = scalar_lea.sflag [#allocation3], %s321
        %s323 = sand.u32 %s184, 1
        %s324 = smul.addr %s323, 32
        %s325 = scalar_lea.vmem [#allocation2], %s324
        %p326 = pneg %p225
        %p327 = pneg %p222
        %s328 = smul.u32 32, %s27
        %p329 = scmp.lt.s32.totalorder %s26, 1
        %s330 = scalar_select %p329, %s26, 1
        %p331 = scmp.lt.s32.totalorder %s328, 31
        %s332 = scalar_select %p331, %s328, 31
        %s333 = smul.addr %s330, 32
        %s334 = sadd.s32 %s332, %s333
        %s335 = smul.addr %s334, 4
        %s336 = scalar_lea.vmem %s7, %s335
        %s337 = smul.u32 32, %s27
        %p338 = scmp.lt.s32.totalorder %s26, 1
        %s339 = scalar_select %p338, %s26, 1
        %p340 = scmp.lt.s32.totalorder %s337, 31
        %s341 = scalar_select %p340, %s337, 31
        %s342 = smul.addr %s339, 32
        %s343 = sadd.s32 %s341, %s342
        %s344 = smul.addr %s343, 8
        %s345 = scalar_lea.vmem %s0, %s344
        %s346 = smul.u32 32, %s27
        %s347 = smul.u32 32, %s27
        %p348 = scmp.lt.s32.totalorder %s26, 1
        %s349 = scalar_select %p348, %s26, 1
        %p350 = scmp.lt.s32.totalorder %s347, 31
        %s351 = scalar_select %p350, %s347, 31
        %s352 = smul.addr %s349, 32
        %s353 = sadd.s32 %s351, %s352
        %s354 = smul.addr %s353, 8
        %s355 = scalar_lea.vmem %s1, %s354
        %s356 = smul.u32 32, %s27
        %s357 = smul.u32 2, %s27
        %s358 = smul.u32 32, %s27
        %p359 = scmp.lt.s32.totalorder %s26, 1
        %s360 = scalar_select %p359, %s26, 1
        %p361 = scmp.lt.s32.totalorder %s358, 31
        %s362 = scalar_select %p361, %s358, 31
        %s363 = smul.addr %s360, 32
        %s364 = sadd.s32 %s362, %s363
        %s365 = smul.addr %s364, 4
        %s366 = scalar_lea.vmem %s7, %s365
        %s367 = smul.u32 32, %s27
        %v369 = vld [vmem:[%s345] sm:$0xff]
        %v370 = vld [vmem:[%s345 + $0x8] sm:$0xff]
        %v371 = vld [vmem:[%s345 + $0x10] sm:$0xff]
        %v372 = vld [vmem:[%s345 + $0x18] sm:$0xff]
        %v373 = vld [vmem:[%s345 + $0x20] sm:$0xff]
        %v374 = vld [vmem:[%s345 + $0x28] sm:$0xff]
        %v375 = vld [vmem:[%s345 + $0x30] sm:$0xff]
        %v376 = vld [vmem:[%s345 + $0x38] sm:$0xff]
        %v377 = vld [vmem:[%s345 + $0x40] sm:$0xff]
        %v378 = vld [vmem:[%s345 + $0x48] sm:$0xff]
        %v379 = vld [vmem:[%s345 + $0x50] sm:$0xff]
        %v380 = vld [vmem:[%s345 + $0x58] sm:$0xff]
        %v381 = vld [vmem:[%s345 + $0x60] sm:$0xff]
        %v382 = vld [vmem:[%s345 + $0x68] sm:$0xff]
        %v383 = vld [vmem:[%s345 + $0x70] sm:$0xff]
        %v384 = vld [vmem:[%s345 + $0x78] sm:$0xff]
        %v385 = vld [vmem:[%s345 + $0x80] sm:$0xff]
        %v386 = vld [vmem:[%s345 + $0x88] sm:$0xff]
        %v387 = vld [vmem:[%s345 + $0x90] sm:$0xff]
        %v388 = vld [vmem:[%s345 + $0x98] sm:$0xff]
        %v389 = vld [vmem:[%s345 + $0xa0] sm:$0xff]
        %v390 = vld [vmem:[%s345 + $0xa8] sm:$0xff]
        %v391 = vld [vmem:[%s345 + $0xb0] sm:$0xff]
        %v392 = vld [vmem:[%s345 + $0xb8] sm:$0xff]
        %v393 = vld [vmem:[%s345 + $0xc0] sm:$0xff]
        %v394 = vld [vmem:[%s345 + $0xc8] sm:$0xff]
        %v395 = vld [vmem:[%s345 + $0xd0] sm:$0xff]
        %v396 = vld [vmem:[%s345 + $0xd8] sm:$0xff]
        %v397 = vld [vmem:[%s345 + $0xe0] sm:$0xff]
        %v398 = vld [vmem:[%s345 + $0xe8] sm:$0xff]
        %v399 = vld [vmem:[%s345 + $0xf0] sm:$0xff]
        %v400 = vld [vmem:[%s345 + $0xf8] sm:$0xff]
        %vm401 = vcmask 261120
        %v402 = vsel %vm401, %v369, 0.0
        %403 = vadd.xlane.f32.xlu0 %v402
        %v404 = vpop.xlane.xlu0 %403
        %v405 = vsel %vm401, %v370, 0.0
        %406 = vadd.xlane.f32.xlu0 %v405
        %v407 = vpop.xlane.xlu0 %406
        %v408 = vsel %vm401, %v371, 0.0
        %409 = vadd.xlane.f32.xlu0 %v408
        %v410 = vpop.xlane.xlu0 %409
        %v411 = vsel %vm401, %v372, 0.0
        %412 = vadd.xlane.f32.xlu0 %v411
        %v413 = vpop.xlane.xlu0 %412
        %v414 = vsel %vm401, %v373, 0.0
        %415 = vadd.xlane.f32.xlu0 %v414
        %v416 = vpop.xlane.xlu0 %415
        %v417 = vsel %vm401, %v374, 0.0
        %418 = vadd.xlane.f32.xlu0 %v417
        %v419 = vpop.xlane.xlu0 %418
        %v420 = vsel %vm401, %v375, 0.0
        %421 = vadd.xlane.f32.xlu0 %v420
        %v422 = vpop.xlane.xlu0 %421
        %v423 = vsel %vm401, %v376, 0.0
        %424 = vadd.xlane.f32.xlu0 %v423
        %v425 = vpop.xlane.xlu0 %424
        %v426 = vsel %vm401, %v377, 0.0
        %427 = vadd.xlane.f32.xlu0 %v426
        %v428 = vpop.xlane.xlu0 %427
        %v429 = vsel %vm401, %v378, 0.0
        %430 = vadd.xlane.f32.xlu0 %v429
        %v431 = vpop.xlane.xlu0 %430
        %v432 = vsel %vm401, %v379, 0.0
        %433 = vadd.xlane.f32.xlu0 %v432
        %v434 = vpop.xlane.xlu0 %433
        %v435 = vsel %vm401, %v380, 0.0
        %436 = vadd.xlane.f32.xlu0 %v435
        %v437 = vpop.xlane.xlu0 %436
        %v438 = vsel %vm401, %v381, 0.0
        %439 = vadd.xlane.f32.xlu0 %v438
        %v440 = vpop.xlane.xlu0 %439
        %v441 = vsel %vm401, %v382, 0.0
        %442 = vadd.xlane.f32.xlu0 %v441
        %v443 = vpop.xlane.xlu0 %442
        %v444 = vsel %vm401, %v383, 0.0
        %445 = vadd.xlane.f32.xlu0 %v444
        %v446 = vpop.xlane.xlu0 %445
        %v447 = vsel %vm401, %v384, 0.0
        %448 = vadd.xlane.f32.xlu0 %v447
        %v449 = vpop.xlane.xlu0 %448
        %v450 = vsel %vm401, %v385, 0.0
        %451 = vadd.xlane.f32.xlu0 %v450
        %v452 = vpop.xlane.xlu0 %451
        %v453 = vsel %vm401, %v386, 0.0
        %454 = vadd.xlane.f32.xlu0 %v453
        %v455 = vpop.xlane.xlu0 %454
        %v456 = vsel %vm401, %v387, 0.0
        %457 = vadd.xlane.f32.xlu0 %v456
        %v458 = vpop.xlane.xlu0 %457
        %v459 = vsel %vm401, %v388, 0.0
        %460 = vadd.xlane.f32.xlu0 %v459
        %v461 = vpop.xlane.xlu0 %460
        %v462 = vsel %vm401, %v389, 0.0
        %463 = vadd.xlane.f32.xlu0 %v462
        %v464 = vpop.xlane.xlu0 %463
        %v465 = vsel %vm401, %v390, 0.0
        %466 = vadd.xlane.f32.xlu0 %v465
        %v467 = vpop.xlane.xlu0 %466
        %v468 = vsel %vm401, %v391, 0.0
        %469 = vadd.xlane.f32.xlu0 %v468
        %v470 = vpop.xlane.xlu0 %469
        %v471 = vsel %vm401, %v392, 0.0
        %472 = vadd.xlane.f32.xlu0 %v471
        %v473 = vpop.xlane.xlu0 %472
        %v474 = vsel %vm401, %v393, 0.0
        %475 = vadd.xlane.f32.xlu0 %v474
        %v476 = vpop.xlane.xlu0 %475
        %v477 = vsel %vm401, %v394, 0.0
        %478 = vadd.xlane.f32.xlu0 %v477
        %v479 = vpop.xlane.xlu0 %478
        %v480 = vsel %vm401, %v395, 0.0
        %481 = vadd.xlane.f32.xlu0 %v480
        %v482 = vpop.xlane.xlu0 %481
        %v483 = vsel %vm401, %v396, 0.0
        %484 = vadd.xlane.f32.xlu0 %v483
        %v485 = vpop.xlane.xlu0 %484
        %v486 = vsel %vm401, %v397, 0.0
        %487 = vadd.xlane.f32.xlu0 %v486
        %v488 = vpop.xlane.xlu0 %487
        %v489 = vsel %vm401, %v398, 0.0
        %490 = vadd.xlane.f32.xlu0 %v489
        %v491 = vpop.xlane.xlu0 %490
        %v492 = vsel %vm401, %v399, 0.0
        %493 = vadd.xlane.f32.xlu0 %v492
        %v494 = vpop.xlane.xlu0 %493
        %v495 = vsel %vm401, %v400, 0.0
        %496 = vadd.xlane.f32.xlu0 %v495
        %v497 = vpop.xlane.xlu0 %496
        %v498 = vrcp.pop 32.0
        %v499 = vmul.f32 32.0, %v498
        %v500 = vsub.f32 1.0, %v499
        %v501 = vmul.f32 %v498, %v500
        %v502 = vadd.f32 %v498, %v501
        %vm503 = vweird.f32 %v498
        %v504 = vsel %vm503, %v498, %v502
        %v505 = vmul.f32 %v404, %v504
        %v506 = vmul.f32 %v407, %v504
        %v507 = vmul.f32 %v410, %v504
        %v508 = vmul.f32 %v413, %v504
        %v509 = vmul.f32 %v416, %v504
        %v510 = vmul.f32 %v419, %v504
        %v511 = vmul.f32 %v422, %v504
        %v512 = vmul.f32 %v425, %v504
        %v513 = vmul.f32 %v428, %v504
        %v514 = vmul.f32 %v431, %v504
        %v515 = vmul.f32 %v434, %v504
        %v516 = vmul.f32 %v437, %v504
        %v517 = vmul.f32 %v440, %v504
        %v518 = vmul.f32 %v443, %v504
        %v519 = vmul.f32 %v446, %v504
        %v520 = vmul.f32 %v449, %v504
        %v521 = vmul.f32 %v452, %v504
        %v522 = vmul.f32 %v455, %v504
        %v523 = vmul.f32 %v458, %v504
        %v524 = vmul.f32 %v461, %v504
        %v525 = vmul.f32 %v464, %v504
        %v526 = vmul.f32 %v467, %v504
        %v527 = vmul.f32 %v470, %v504
        %v528 = vmul.f32 %v473, %v504
        %v529 = vmul.f32 %v476, %v504
        %v530 = vmul.f32 %v479, %v504
        %v531 = vmul.f32 %v482, %v504
        %v532 = vmul.f32 %v485, %v504
        %v533 = vmul.f32 %v488, %v504
        %v534 = vmul.f32 %v491, %v504
        %v535 = vmul.f32 %v494, %v504
        %v536 = vmul.f32 %v497, %v504
        %v537 = vsub.f32 %v369, %v505
        %v538 = vsub.f32 %v370, %v506
        %v539 = vsub.f32 %v371, %v507
        %v540 = vsub.f32 %v372, %v508
        %v541 = vsub.f32 %v373, %v509
        %v542 = vsub.f32 %v374, %v510
        %v543 = vsub.f32 %v375, %v511
        %v544 = vsub.f32 %v376, %v512
        %v545 = vsub.f32 %v377, %v513
        %v546 = vsub.f32 %v378, %v514
        %v547 = vsub.f32 %v379, %v515
        %v548 = vsub.f32 %v380, %v516
        %v549 = vsub.f32 %v381, %v517
        %v550 = vsub.f32 %v382, %v518
        %v551 = vsub.f32 %v383, %v519
        %v552 = vsub.f32 %v384, %v520
        %v553 = vsub.f32 %v385, %v521
        %v554 = vsub.f32 %v386, %v522
        %v555 = vsub.f32 %v387, %v523
        %v556 = vsub.f32 %v388, %v524
        %v557 = vsub.f32 %v389, %v525
        %v558 = vsub.f32 %v390, %v526
        %v559 = vsub.f32 %v391, %v527
        %v560 = vsub.f32 %v392, %v528
        %v561 = vsub.f32 %v393, %v529
        %v562 = vsub.f32 %v394, %v530
        %v563 = vsub.f32 %v395, %v531
        %v564 = vsub.f32 %v396, %v532
        %v565 = vsub.f32 %v397, %v533
        %v566 = vsub.f32 %v398, %v534
        %v567 = vsub.f32 %v399, %v535
        %v568 = vsub.f32 %v400, %v536
        %v569 = vmul.f32 %v537, %v537
        %v570 = vmul.f32 %v538, %v538
        %v571 = vmul.f32 %v539, %v539
        %v572 = vmul.f32 %v540, %v540
        %v573 = vmul.f32 %v541, %v541
        %v574 = vmul.f32 %v542, %v542
        %v575 = vmul.f32 %v543, %v543
        %v576 = vmul.f32 %v544, %v544
        %v577 = vmul.f32 %v545, %v545
        %v578 = vmul.f32 %v546, %v546
        %v579 = vmul.f32 %v547, %v547
        %v580 = vmul.f32 %v548, %v548
        %v581 = vmul.f32 %v549, %v549
        %v582 = vmul.f32 %v550, %v550
        %v583 = vmul.f32 %v551, %v551
        %v584 = vmul.f32 %v552, %v552
        %v585 = vmul.f32 %v553, %v553
        %v586 = vmul.f32 %v554, %v554
        %v587 = vmul.f32 %v555, %v555
        %v588 = vmul.f32 %v556, %v556
        %v589 = vmul.f32 %v557, %v557
        %v590 = vmul.f32 %v558, %v558
        %v591 = vmul.f32 %v559, %v559
        %v592 = vmul.f32 %v560, %v560
        %v593 = vmul.f32 %v561, %v561
        %v594 = vmul.f32 %v562, %v562
        %v595 = vmul.f32 %v563, %v563
        %v596 = vmul.f32 %v564, %v564
        %v597 = vmul.f32 %v565, %v565
        %v598 = vmul.f32 %v566, %v566
        %v599 = vmul.f32 %v567, %v567
        %v600 = vmul.f32 %v568, %v568
        %v601 = vsel %vm401, %v569, 0.0
        %602 = vadd.xlane.f32.xlu0 %v601
        %v603 = vpop.xlane.xlu0 %602
        %v604 = vsel %vm401, %v570, 0.0
        %605 = vadd.xlane.f32.xlu0 %v604
        %v606 = vpop.xlane.xlu0 %605
        %v607 = vsel %vm401, %v571, 0.0
        %608 = vadd.xlane.f32.xlu0 %v607
        %v609 = vpop.xlane.xlu0 %608
        %v610 = vsel %vm401, %v572, 0.0
        %611 = vadd.xlane.f32.xlu0 %v610
        %v612 = vpop.xlane.xlu0 %611
        %v613 = vsel %vm401, %v573, 0.0
        %614 = vadd.xlane.f32.xlu0 %v613
        %v615 = vpop.xlane.xlu0 %614
        %v616 = vsel %vm401, %v574, 0.0
        %617 = vadd.xlane.f32.xlu0 %v616
        %v618 = vpop.xlane.xlu0 %617
        %v619 = vsel %vm401, %v575, 0.0
        %620 = vadd.xlane.f32.xlu0 %v619
        %v621 = vpop.xlane.xlu0 %620
        %v622 = vsel %vm401, %v576, 0.0
        %623 = vadd.xlane.f32.xlu0 %v622
        %v624 = vpop.xlane.xlu0 %623
        %v625 = vsel %vm401, %v577, 0.0
        %626 = vadd.xlane.f32.xlu0 %v625
        %v627 = vpop.xlane.xlu0 %626
        %v628 = vsel %vm401, %v578, 0.0
        %629 = vadd.xlane.f32.xlu0 %v628
        %v630 = vpop.xlane.xlu0 %629
        %v631 = vsel %vm401, %v579, 0.0
        %632 = vadd.xlane.f32.xlu0 %v631
        %v633 = vpop.xlane.xlu0 %632
        %v634 = vsel %vm401, %v580, 0.0
        %635 = vadd.xlane.f32.xlu0 %v634
        %v636 = vpop.xlane.xlu0 %635
        %v637 = vsel %vm401, %v581, 0.0
        %638 = vadd.xlane.f32.xlu0 %v637
        %v639 = vpop.xlane.xlu0 %638
        %v640 = vsel %vm401, %v582, 0.0
        %641 = vadd.xlane.f32.xlu0 %v640
        %v642 = vpop.xlane.xlu0 %641
        %v643 = vsel %vm401, %v583, 0.0
        %644 = vadd.xlane.f32.xlu0 %v643
        %v645 = vpop.xlane.xlu0 %644
        %v646 = vsel %vm401, %v584, 0.0
        %647 = vadd.xlane.f32.xlu0 %v646
        %v648 = vpop.xlane.xlu0 %647
        %v649 = vsel %vm401, %v585, 0.0
        %650 = vadd.xlane.f32.xlu0 %v649
        %v651 = vpop.xlane.xlu0 %650
        %v652 = vsel %vm401, %v586, 0.0
        %653 = vadd.xlane.f32.xlu0 %v652
        %v654 = vpop.xlane.xlu0 %653
        %v655 = vsel %vm401, %v587, 0.0
        %656 = vadd.xlane.f32.xlu0 %v655
        %v657 = vpop.xlane.xlu0 %656
        %v658 = vsel %vm401, %v588, 0.0
        %659 = vadd.xlane.f32.xlu0 %v658
        %v660 = vpop.xlane.xlu0 %659
        %v661 = vsel %vm401, %v589, 0.0
        %662 = vadd.xlane.f32.xlu0 %v661
        %v663 = vpop.xlane.xlu0 %662
        %v664 = vsel %vm401, %v590, 0.0
        %665 = vadd.xlane.f32.xlu0 %v664
        %v666 = vpop.xlane.xlu0 %665
        %v667 = vsel %vm401, %v591, 0.0
        %668 = vadd.xlane.f32.xlu0 %v667
        %v669 = vpop.xlane.xlu0 %668
        %v670 = vsel %vm401, %v592, 0.0
        %671 = vadd.xlane.f32.xlu0 %v670
        %v672 = vpop.xlane.xlu0 %671
        %v673 = vsel %vm401, %v593, 0.0
        %674 = vadd.xlane.f32.xlu0 %v673
        %v675 = vpop.xlane.xlu0 %674
        %v676 = vsel %vm401, %v594, 0.0
        %677 = vadd.xlane.f32.xlu0 %v676
        %v678 = vpop.xlane.xlu0 %677
        %v679 = vsel %vm401, %v595, 0.0
        %680 = vadd.xlane.f32.xlu0 %v679
        %v681 = vpop.xlane.xlu0 %680
        %v682 = vsel %vm401, %v596, 0.0
        %683 = vadd.xlane.f32.xlu0 %v682
        %v684 = vpop.xlane.xlu0 %683
        %v685 = vsel %vm401, %v597, 0.0
        %686 = vadd.xlane.f32.xlu0 %v685
        %v687 = vpop.xlane.xlu0 %686
        %v688 = vsel %vm401, %v598, 0.0
        %689 = vadd.xlane.f32.xlu0 %v688
        %v690 = vpop.xlane.xlu0 %689
        %v691 = vsel %vm401, %v599, 0.0
        %692 = vadd.xlane.f32.xlu0 %v691
        %v693 = vpop.xlane.xlu0 %692
        %v694 = vsel %vm401, %v600, 0.0
        %695 = vadd.xlane.f32.xlu0 %v694
        %v696 = vpop.xlane.xlu0 %695
        %v697 = vmul.f32 %v603, %v504
        %v698 = vmul.f32 %v606, %v504
        %v699 = vmul.f32 %v609, %v504
        %v700 = vmul.f32 %v612, %v504
        %v701 = vmul.f32 %v615, %v504
        %v702 = vmul.f32 %v618, %v504
        %v703 = vmul.f32 %v621, %v504
        %v704 = vmul.f32 %v624, %v504
        %v705 = vmul.f32 %v627, %v504
        %v706 = vmul.f32 %v630, %v504
        %v707 = vmul.f32 %v633, %v504
        %v708 = vmul.f32 %v636, %v504
        %v709 = vmul.f32 %v639, %v504
        %v710 = vmul.f32 %v642, %v504
        %v711 = vmul.f32 %v645, %v504
        %v712 = vmul.f32 %v648, %v504
        %v713 = vmul.f32 %v651, %v504
        %v714 = vmul.f32 %v654, %v504
        %v715 = vmul.f32 %v657, %v504
        %v716 = vmul.f32 %v660, %v504
        %v717 = vmul.f32 %v663, %v504
        %v718 = vmul.f32 %v666, %v504
        %v719 = vmul.f32 %v669, %v504
        %v720 = vmul.f32 %v672, %v504
        %v721 = vmul.f32 %v675, %v504
        %v722 = vmul.f32 %v678, %v504
        %v723 = vmul.f32 %v681, %v504
        %v724 = vmul.f32 %v684, %v504
        %v725 = vmul.f32 %v687, %v504
        %v726 = vmul.f32 %v690, %v504
        %v727 = vmul.f32 %v693, %v504
        %v728 = vmul.f32 %v696, %v504
        %v729 = vadd.f32 %v697, 1e-05
        %v730 = vadd.f32 %v698, 1e-05
        %v731 = vadd.f32 %v699, 1e-05
        %v732 = vadd.f32 %v700, 1e-05
        %v733 = vadd.f32 %v701, 1e-05
        %v734 = vadd.f32 %v702, 1e-05
        %v735 = vadd.f32 %v703, 1e-05
        %v736 = vadd.f32 %v704, 1e-05
        %v737 = vadd.f32 %v705, 1e-05
        %v738 = vadd.f32 %v706, 1e-05
        %v739 = vadd.f32 %v707, 1e-05
        %v740 = vadd.f32 %v708, 1e-05
        %v741 = vadd.f32 %v709, 1e-05
        %v742 = vadd.f32 %v710, 1e-05
        %v743 = vadd.f32 %v711, 1e-05
        %v744 = vadd.f32 %v712, 1e-05
        %v745 = vadd.f32 %v713, 1e-05
        %v746 = vadd.f32 %v714, 1e-05
        %v747 = vadd.f32 %v715, 1e-05
        %v748 = vadd.f32 %v716, 1e-05
        %v749 = vadd.f32 %v717, 1e-05
        %v750 = vadd.f32 %v718, 1e-05
        %v751 = vadd.f32 %v719, 1e-05
        %v752 = vadd.f32 %v720, 1e-05
        %v753 = vadd.f32 %v721, 1e-05
        %v754 = vadd.f32 %v722, 1e-05
        %v755 = vadd.f32 %v723, 1e-05
        %v756 = vadd.f32 %v724, 1e-05
        %v757 = vadd.f32 %v725, 1e-05
        %v758 = vadd.f32 %v726, 1e-05
        %v759 = vadd.f32 %v727, 1e-05
        %v760 = vadd.f32 %v728, 1e-05
        %v761 = vrsqrt.pop %v729
        %v762 = vmul.f32 %v761, %v729
        %v763 = vmul.f32 %v762, %v761
        %v764 = vmul.f32 0.5, %v763
        %v765 = vsub.f32 1.5, %v764
        %v766 = vmul.f32 %v761, %v765
        %vm767 = vweird.f32 %v729
        %vm768 = vweird.f32 %v761
        %vm769 = vmor %vm767, %vm768
        %v770 = vsel %vm769, %v761, %v766
        %v771 = vrsqrt.pop %v730
        %v772 = vmul.f32 %v771, %v730
        %v773 = vmul.f32 %v772, %v771
        %v774 = vmul.f32 0.5, %v773
        %v775 = vsub.f32 1.5, %v774
        %v776 = vmul.f32 %v771, %v775
        %vm777 = vweird.f32 %v730
        %vm778 = vweird.f32 %v771
        %vm779 = vmor %vm777, %vm778
        %v780 = vsel %vm779, %v771, %v776
        %v781 = vrsqrt.pop %v731
        %v782 = vmul.f32 %v781, %v731
        %v783 = vmul.f32 %v782, %v781
        %v784 = vmul.f32 0.5, %v783
        %v785 = vsub.f32 1.5, %v784
        %v786 = vmul.f32 %v781, %v785
        %vm787 = vweird.f32 %v731
        %vm788 = vweird.f32 %v781
        %vm789 = vmor %vm787, %vm788
        %v790 = vsel %vm789, %v781, %v786
        %v791 = vrsqrt.pop %v732
        %v792 = vmul.f32 %v791, %v732
        %v793 = vmul.f32 %v792, %v791
        %v794 = vmul.f32 0.5, %v793
        %v795 = vsub.f32 1.5, %v794
        %v796 = vmul.f32 %v791, %v795
        %vm797 = vweird.f32 %v732
        %vm798 = vweird.f32 %v791
        %vm799 = vmor %vm797, %vm798
        %v800 = vsel %vm799, %v791, %v796
        %v801 = vrsqrt.pop %v733
        %v802 = vmul.f32 %v801, %v733
        %v803 = vmul.f32 %v802, %v801
        %v804 = vmul.f32 0.5, %v803
        %v805 = vsub.f32 1.5, %v804
        %v806 = vmul.f32 %v801, %v805
        %vm807 = vweird.f32 %v733
        %vm808 = vweird.f32 %v801
        %vm809 = vmor %vm807, %vm808
        %v810 = vsel %vm809, %v801, %v806
        %v811 = vrsqrt.pop %v734
        %v812 = vmul.f32 %v811, %v734
        %v813 = vmul.f32 %v812, %v811
        %v814 = vmul.f32 0.5, %v813
        %v815 = vsub.f32 1.5, %v814
        %v816 = vmul.f32 %v811, %v815
        %vm817 = vweird.f32 %v734
        %vm818 = vweird.f32 %v811
        %vm819 = vmor %vm817, %vm818
        %v820 = vsel %vm819, %v811, %v816
        %v821 = vrsqrt.pop %v735
        %v822 = vmul.f32 %v821, %v735
        %v823 = vmul.f32 %v822, %v821
        %v824 = vmul.f32 0.5, %v823
        %v825 = vsub.f32 1.5, %v824
        %v826 = vmul.f32 %v821, %v825
        %vm827 = vweird.f32 %v735
        %vm828 = vweird.f32 %v821
        %vm829 = vmor %vm827, %vm828
        %v830 = vsel %vm829, %v821, %v826
        %v831 = vrsqrt.pop %v736
        %v832 = vmul.f32 %v831, %v736
        %v833 = vmul.f32 %v832, %v831
        %v834 = vmul.f32 0.5, %v833
        %v835 = vsub.f32 1.5, %v834
        %v836 = vmul.f32 %v831, %v835
        %vm837 = vweird.f32 %v736
        %vm838 = vweird.f32 %v831
        %vm839 = vmor %vm837, %vm838
        %v840 = vsel %vm839, %v831, %v836
        %v841 = vrsqrt.pop %v737
        %v842 = vmul.f32 %v841, %v737
        %v843 = vmul.f32 %v842, %v841
        %v844 = vmul.f32 0.5, %v843
        %v845 = vsub.f32 1.5, %v844
        %v846 = vmul.f32 %v841, %v845
        %vm847 = vweird.f32 %v737
        %vm848 = vweird.f32 %v841
        %vm849 = vmor %vm847, %vm848
        %v850 = vsel %vm849, %v841, %v846
        %v851 = vrsqrt.pop %v738
        %v852 = vmul.f32 %v851, %v738
        %v853 = vmul.f32 %v852, %v851
        %v854 = vmul.f32 0.5, %v853
        %v855 = vsub.f32 1.5, %v854
        %v856 = vmul.f32 %v851, %v855
        %vm857 = vweird.f32 %v738
        %vm858 = vweird.f32 %v851
        %vm859 = vmor %vm857, %vm858
        %v860 = vsel %vm859, %v851, %v856
        %v861 = vrsqrt.pop %v739
        %v862 = vmul.f32 %v861, %v739
        %v863 = vmul.f32 %v862, %v861
        %v864 = vmul.f32 0.5, %v863
        %v865 = vsub.f32 1.5, %v864
        %v866 = vmul.f32 %v861, %v865
        %vm867 = vweird.f32 %v739
        %vm868 = vweird.f32 %v861
        %vm869 = vmor %vm867, %vm868
        %v870 = vsel %vm869, %v861, %v866
        %v871 = vrsqrt.pop %v740
        %v872 = vmul.f32 %v871, %v740
        %v873 = vmul.f32 %v872, %v871
        %v874 = vmul.f32 0.5, %v873
        %v875 = vsub.f32 1.5, %v874
        %v876 = vmul.f32 %v871, %v875
        %vm877 = vweird.f32 %v740
        %vm878 = vweird.f32 %v871
        %vm879 = vmor %vm877, %vm878
        %v880 = vsel %vm879, %v871, %v876
        %v881 = vrsqrt.pop %v741
        %v882 = vmul.f32 %v881, %v741
        %v883 = vmul.f32 %v882, %v881
        %v884 = vmul.f32 0.5, %v883
        %v885 = vsub.f32 1.5, %v884
        %v886 = vmul.f32 %v881, %v885
        %vm887 = vweird.f32 %v741
        %vm888 = vweird.f32 %v881
        %vm889 = vmor %vm887, %vm888
        %v890 = vsel %vm889, %v881, %v886
        %v891 = vrsqrt.pop %v742
        %v892 = vmul.f32 %v891, %v742
        %v893 = vmul.f32 %v892, %v891
        %v894 = vmul.f32 0.5, %v893
        %v895 = vsub.f32 1.5, %v894
        %v896 = vmul.f32 %v891, %v895
        %vm897 = vweird.f32 %v742
        %vm898 = vweird.f32 %v891
        %vm899 = vmor %vm897, %vm898
        %v900 = vsel %vm899, %v891, %v896
        %v901 = vrsqrt.pop %v743
        %v902 = vmul.f32 %v901, %v743
        %v903 = vmul.f32 %v902, %v901
        %v904 = vmul.f32 0.5, %v903
        %v905 = vsub.f32 1.5, %v904
        %v906 = vmul.f32 %v901, %v905
        %vm907 = vweird.f32 %v743
        %vm908 = vweird.f32 %v901
        %vm909 = vmor %vm907, %vm908
        %v910 = vsel %vm909, %v901, %v906
        %v911 = vrsqrt.pop %v744
        %v912 = vmul.f32 %v911, %v744
        %v913 = vmul.f32 %v912, %v911
        %v914 = vmul.f32 0.5, %v913
        %v915 = vsub.f32 1.5, %v914
        %v916 = vmul.f32 %v911, %v915
        %vm917 = vweird.f32 %v744
        %vm918 = vweird.f32 %v911
        %vm919 = vmor %vm917, %vm918
        %v920 = vsel %vm919, %v911, %v916
        %v921 = vrsqrt.pop %v745
        %v922 = vmul.f32 %v921, %v745
        %v923 = vmul.f32 %v922, %v921
        %v924 = vmul.f32 0.5, %v923
        %v925 = vsub.f32 1.5, %v924
        %v926 = vmul.f32 %v921, %v925
        %vm927 = vweird.f32 %v745
        %vm928 = vweird.f32 %v921
        %vm929 = vmor %vm927, %vm928
        %v930 = vsel %vm929, %v921, %v926
        %v931 = vrsqrt.pop %v746
        %v932 = vmul.f32 %v931, %v746
        %v933 = vmul.f32 %v932, %v931
        %v934 = vmul.f32 0.5, %v933
        %v935 = vsub.f32 1.5, %v934
        %v936 = vmul.f32 %v931, %v935
        %vm937 = vweird.f32 %v746
        %vm938 = vweird.f32 %v931
        %vm939 = vmor %vm937, %vm938
        %v940 = vsel %vm939, %v931, %v936
        %v941 = vrsqrt.pop %v747
        %v942 = vmul.f32 %v941, %v747
        %v943 = vmul.f32 %v942, %v941
        %v944 = vmul.f32 0.5, %v943
        %v945 = vsub.f32 1.5, %v944
        %v946 = vmul.f32 %v941, %v945
        %vm947 = vweird.f32 %v747
        %vm948 = vweird.f32 %v941
        %vm949 = vmor %vm947, %vm948
        %v950 = vsel %vm949, %v941, %v946
        %v951 = vrsqrt.pop %v748
        %v952 = vmul.f32 %v951, %v748
        %v953 = vmul.f32 %v952, %v951
        %v954 = vmul.f32 0.5, %v953
        %v955 = vsub.f32 1.5, %v954
        %v956 = vmul.f32 %v951, %v955
        %vm957 = vweird.f32 %v748
        %vm958 = vweird.f32 %v951
        %vm959 = vmor %vm957, %vm958
        %v960 = vsel %vm959, %v951, %v956
        %v961 = vrsqrt.pop %v749
        %v962 = vmul.f32 %v961, %v749
        %v963 = vmul.f32 %v962, %v961
        %v964 = vmul.f32 0.5, %v963
        %v965 = vsub.f32 1.5, %v964
        %v966 = vmul.f32 %v961, %v965
        %vm967 = vweird.f32 %v749
        %vm968 = vweird.f32 %v961
        %vm969 = vmor %vm967, %vm968
        %v970 = vsel %vm969, %v961, %v966
        %v971 = vrsqrt.pop %v750
        %v972 = vmul.f32 %v971, %v750
        %v973 = vmul.f32 %v972, %v971
        %v974 = vmul.f32 0.5, %v973
        %v975 = vsub.f32 1.5, %v974
        %v976 = vmul.f32 %v971, %v975
        %vm977 = vweird.f32 %v750
        %vm978 = vweird.f32 %v971
        %vm979 = vmor %vm977, %vm978
        %v980 = vsel %vm979, %v971, %v976
        %v981 = vrsqrt.pop %v751
        %v982 = vmul.f32 %v981, %v751
        %v983 = vmul.f32 %v982, %v981
        %v984 = vmul.f32 0.5, %v983
        %v985 = vsub.f32 1.5, %v984
        %v986 = vmul.f32 %v981, %v985
        %vm987 = vweird.f32 %v751
        %vm988 = vweird.f32 %v981
        %vm989 = vmor %vm987, %vm988
        %v990 = vsel %vm989, %v981, %v986
        %v991 = vrsqrt.pop %v752
        %v992 = vmul.f32 %v991, %v752
        %v993 = vmul.f32 %v992, %v991
        %v994 = vmul.f32 0.5, %v993
        %v995 = vsub.f32 1.5, %v994
        %v996 = vmul.f32 %v991, %v995
        %vm997 = vweird.f32 %v752
        %vm998 = vweird.f32 %v991
        %vm999 = vmor %vm997, %vm998
        %v1000 = vsel %vm999, %v991, %v996
        %v1001 = vrsqrt.pop %v753
        %v1002 = vmul.f32 %v1001, %v753
        %v1003 = vmul.f32 %v1002, %v1001
        %v1004 = vmul.f32 0.5, %v1003
        %v1005 = vsub.f32 1.5, %v1004
        %v1006 = vmul.f32 %v1001, %v1005
        %vm1007 = vweird.f32 %v753
        %vm1008 = vweird.f32 %v1001
        %vm1009 = vmor %vm1007, %vm1008
        %v1010 = vsel %vm1009, %v1001, %v1006
        %v1011 = vrsqrt.pop %v754
        %v1012 = vmul.f32 %v1011, %v754
        %v1013 = vmul.f32 %v1012, %v1011
        %v1014 = vmul.f32 0.5, %v1013
        %v1015 = vsub.f32 1.5, %v1014
        %v1016 = vmul.f32 %v1011, %v1015
        %vm1017 = vweird.f32 %v754
        %vm1018 = vweird.f32 %v1011
        %vm1019 = vmor %vm1017, %vm1018
        %v1020 = vsel %vm1019, %v1011, %v1016
        %v1021 = vrsqrt.pop %v755
        %v1022 = vmul.f32 %v1021, %v755
        %v1023 = vmul.f32 %v1022, %v1021
        %v1024 = vmul.f32 0.5, %v1023
        %v1025 = vsub.f32 1.5, %v1024
        %v1026 = vmul.f32 %v1021, %v1025
        %vm1027 = vweird.f32 %v755
        %vm1028 = vweird.f32 %v1021
        %vm1029 = vmor %vm1027, %vm1028
        %v1030 = vsel %vm1029, %v1021, %v1026
        %v1031 = vrsqrt.pop %v756
        %v1032 = vmul.f32 %v1031, %v756
        %v1033 = vmul.f32 %v1032, %v1031
        %v1034 = vmul.f32 0.5, %v1033
        %v1035 = vsub.f32 1.5, %v1034
        %v1036 = vmul.f32 %v1031, %v1035
        %vm1037 = vweird.f32 %v756
        %vm1038 = vweird.f32 %v1031
        %vm1039 = vmor %vm1037, %vm1038
        %v1040 = vsel %vm1039, %v1031, %v1036
        %v1041 = vrsqrt.pop %v757
        %v1042 = vmul.f32 %v1041, %v757
        %v1043 = vmul.f32 %v1042, %v1041
        %v1044 = vmul.f32 0.5, %v1043
        %v1045 = vsub.f32 1.5, %v1044
        %v1046 = vmul.f32 %v1041, %v1045
        %vm1047 = vweird.f32 %v757
        %vm1048 = vweird.f32 %v1041
        %vm1049 = vmor %vm1047, %vm1048
        %v1050 = vsel %vm1049, %v1041, %v1046
        %v1051 = vrsqrt.pop %v758
        %v1052 = vmul.f32 %v1051, %v758
        %v1053 = vmul.f32 %v1052, %v1051
        %v1054 = vmul.f32 0.5, %v1053
        %v1055 = vsub.f32 1.5, %v1054
        %v1056 = vmul.f32 %v1051, %v1055
        %vm1057 = vweird.f32 %v758
        %vm1058 = vweird.f32 %v1051
        %vm1059 = vmor %vm1057, %vm1058
        %v1060 = vsel %vm1059, %v1051, %v1056
        %v1061 = vrsqrt.pop %v759
        %v1062 = vmul.f32 %v1061, %v759
        %v1063 = vmul.f32 %v1062, %v1061
        %v1064 = vmul.f32 0.5, %v1063
        %v1065 = vsub.f32 1.5, %v1064
        %v1066 = vmul.f32 %v1061, %v1065
        %vm1067 = vweird.f32 %v759
        %vm1068 = vweird.f32 %v1061
        %vm1069 = vmor %vm1067, %vm1068
        %v1070 = vsel %vm1069, %v1061, %v1066
        %v1071 = vrsqrt.pop %v760
        %v1072 = vmul.f32 %v1071, %v760
        %v1073 = vmul.f32 %v1072, %v1071
        %v1074 = vmul.f32 0.5, %v1073
        %v1075 = vsub.f32 1.5, %v1074
        %v1076 = vmul.f32 %v1071, %v1075
        %vm1077 = vweird.f32 %v760
        %vm1078 = vweird.f32 %v1071
        %vm1079 = vmor %vm1077, %vm1078
        %v1080 = vsel %vm1079, %v1071, %v1076
        %v1081 = vmul.f32 %v537, %v770
        %v1082 = vmul.f32 %v538, %v780
        %v1083 = vmul.f32 %v539, %v790
        %v1084 = vmul.f32 %v540, %v800
        %v1085 = vmul.f32 %v541, %v810
        %v1086 = vmul.f32 %v542, %v820
        %v1087 = vmul.f32 %v543, %v830
        %v1088 = vmul.f32 %v544, %v840
        %v1089 = vmul.f32 %v545, %v850
        %v1090 = vmul.f32 %v546, %v860
        %v1091 = vmul.f32 %v547, %v870
        %v1092 = vmul.f32 %v548, %v880
        %v1093 = vmul.f32 %v549, %v890
        %v1094 = vmul.f32 %v550, %v900
        %v1095 = vmul.f32 %v551, %v910
        %v1096 = vmul.f32 %v552, %v920
        %v1097 = vmul.f32 %v553, %v930
        %v1098 = vmul.f32 %v554, %v940
        %v1099 = vmul.f32 %v555, %v950
        %v1100 = vmul.f32 %v556, %v960
        %v1101 = vmul.f32 %v557, %v970
        %v1102 = vmul.f32 %v558, %v980
        %v1103 = vmul.f32 %v559, %v990
        %v1104 = vmul.f32 %v560, %v1000
        %v1105 = vmul.f32 %v561, %v1010
        %v1106 = vmul.f32 %v562, %v1020
        %v1107 = vmul.f32 %v563, %v1030
        %v1108 = vmul.f32 %v564, %v1040
        %v1109 = vmul.f32 %v565, %v1050
        %v1110 = vmul.f32 %v566, %v1060
        %v1111 = vmul.f32 %v567, %v1070
        %v1112 = vmul.f32 %v568, %v1080
        %v1113 = vld [vmem:[%s2] sm:$0x1]
        %v1115 = vperm.slane %v1113, 0
        %v1117 = vmul.f32 %v1081, %v1115
        %v1118 = vmul.f32 %v1082, %v1115
        %v1119 = vmul.f32 %v1083, %v1115
        %v1120 = vmul.f32 %v1084, %v1115
        %v1121 = vmul.f32 %v1085, %v1115
        %v1122 = vmul.f32 %v1086, %v1115
        %v1123 = vmul.f32 %v1087, %v1115
        %v1124 = vmul.f32 %v1088, %v1115
        %v1125 = vmul.f32 %v1089, %v1115
        %v1126 = vmul.f32 %v1090, %v1115
        %v1127 = vmul.f32 %v1091, %v1115
        %v1128 = vmul.f32 %v1092, %v1115
        %v1129 = vmul.f32 %v1093, %v1115
        %v1130 = vmul.f32 %v1094, %v1115
        %v1131 = vmul.f32 %v1095, %v1115
        %v1132 = vmul.f32 %v1096, %v1115
        %v1133 = vmul.f32 %v1097, %v1115
        %v1134 = vmul.f32 %v1098, %v1115
        %v1135 = vmul.f32 %v1099, %v1115
        %v1136 = vmul.f32 %v1100, %v1115
        %v1137 = vmul.f32 %v1101, %v1115
        %v1138 = vmul.f32 %v1102, %v1115
        %v1139 = vmul.f32 %v1103, %v1115
        %v1140 = vmul.f32 %v1104, %v1115
        %v1141 = vmul.f32 %v1105, %v1115
        %v1142 = vmul.f32 %v1106, %v1115
        %v1143 = vmul.f32 %v1107, %v1115
        %v1144 = vmul.f32 %v1108, %v1115
        %v1145 = vmul.f32 %v1109, %v1115
        %v1146 = vmul.f32 %v1110, %v1115
        %v1147 = vmul.f32 %v1111, %v1115
        %v1148 = vmul.f32 %v1112, %v1115
        %v1149 = vld [vmem:[%s3] sm:$0x1]
        %v1151 = vperm.slane %v1149, 0
        %v1153 = vadd.f32 %v1117, %v1151
        %v1154 = vadd.f32 %v1118, %v1151
        %v1155 = vadd.f32 %v1119, %v1151
        %v1156 = vadd.f32 %v1120, %v1151
        %v1157 = vadd.f32 %v1121, %v1151
        %v1158 = vadd.f32 %v1122, %v1151
        %v1159 = vadd.f32 %v1123, %v1151
        %v1160 = vadd.f32 %v1124, %v1151
        %v1161 = vadd.f32 %v1125, %v1151
        %v1162 = vadd.f32 %v1126, %v1151
        %v1163 = vadd.f32 %v1127, %v1151
        %v1164 = vadd.f32 %v1128, %v1151
        %v1165 = vadd.f32 %v1129, %v1151
        %v1166 = vadd.f32 %v1130, %v1151
        %v1167 = vadd.f32 %v1131, %v1151
        %v1168 = vadd.f32 %v1132, %v1151
        %v1169 = vadd.f32 %v1133, %v1151
        %v1170 = vadd.f32 %v1134, %v1151
        %v1171 = vadd.f32 %v1135, %v1151
        %v1172 = vadd.f32 %v1136, %v1151
        %v1173 = vadd.f32 %v1137, %v1151
        %v1174 = vadd.f32 %v1138, %v1151
        %v1175 = vadd.f32 %v1139, %v1151
        %v1176 = vadd.f32 %v1140, %v1151
        %v1177 = vadd.f32 %v1141, %v1151
        %v1178 = vadd.f32 %v1142, %v1151
        %v1179 = vadd.f32 %v1143, %v1151
        %v1180 = vadd.f32 %v1144, %v1151
        %v1181 = vadd.f32 %v1145, %v1151
        %v1182 = vadd.f32 %v1146, %v1151
        %v1183 = vadd.f32 %v1147, %v1151
        %v1184 = vadd.f32 %v1148, %v1151
        %v1185 = vld [vmem:[%s355] sm:$0xff]
        %v1186 = vld [vmem:[%s355 + $0x8] sm:$0xff]
        %v1187 = vld [vmem:[%s355 + $0x10] sm:$0xff]
        %v1188 = vld [vmem:[%s355 + $0x18] sm:$0xff]
        %v1189 = vld [vmem:[%s355 + $0x20] sm:$0xff]
        %v1190 = vld [vmem:[%s355 + $0x28] sm:$0xff]
        %v1191 = vld [vmem:[%s355 + $0x30] sm:$0xff]
        %v1192 = vld [vmem:[%s355 + $0x38] sm:$0xff]
        %v1193 = vld [vmem:[%s355 + $0x40] sm:$0xff]
        %v1194 = vld [vmem:[%s355 + $0x48] sm:$0xff]
        %v1195 = vld [vmem:[%s355 + $0x50] sm:$0xff]
        %v1196 = vld [vmem:[%s355 + $0x58] sm:$0xff]
        %v1197 = vld [vmem:[%s355 + $0x60] sm:$0xff]
        %v1198 = vld [vmem:[%s355 + $0x68] sm:$0xff]
        %v1199 = vld [vmem:[%s355 + $0x70] sm:$0xff]
        %v1200 = vld [vmem:[%s355 + $0x78] sm:$0xff]
        %v1201 = vld [vmem:[%s355 + $0x80] sm:$0xff]
        %v1202 = vld [vmem:[%s355 + $0x88] sm:$0xff]
        %v1203 = vld [vmem:[%s355 + $0x90] sm:$0xff]
        %v1204 = vld [vmem:[%s355 + $0x98] sm:$0xff]
        %v1205 = vld [vmem:[%s355 + $0xa0] sm:$0xff]
        %v1206 = vld [vmem:[%s355 + $0xa8] sm:$0xff]
        %v1207 = vld [vmem:[%s355 + $0xb0] sm:$0xff]
        %v1208 = vld [vmem:[%s355 + $0xb8] sm:$0xff]
        %v1209 = vld [vmem:[%s355 + $0xc0] sm:$0xff]
        %v1210 = vld [vmem:[%s355 + $0xc8] sm:$0xff]
        %v1211 = vld [vmem:[%s355 + $0xd0] sm:$0xff]
        %v1212 = vld [vmem:[%s355 + $0xd8] sm:$0xff]
        %v1213 = vld [vmem:[%s355 + $0xe0] sm:$0xff]
        %v1214 = vld [vmem:[%s355 + $0xe8] sm:$0xff]
        %v1215 = vld [vmem:[%s355 + $0xf0] sm:$0xff]
        %v1216 = vld [vmem:[%s355 + $0xf8] sm:$0xff]
        %1218 = vset.pattern.permute.xlu0 0
        %1219 = vperm.xlu0 %1218, %v1185
        %v1220 = vpop.permute.xlu0 %1219
        %1223 = vset.pattern.permute.xlu0 0
        %1224 = vperm.xlu0 %1223, %v1186
        %v1225 = vpop.permute.xlu0 %1224
        %1228 = vset.pattern.permute.xlu0 0
        %1229 = vperm.xlu0 %1228, %v1187
        %v1230 = vpop.permute.xlu0 %1229
        %1233 = vset.pattern.permute.xlu0 0
        %1234 = vperm.xlu0 %1233, %v1188
        %v1235 = vpop.permute.xlu0 %1234
        %1238 = vset.pattern.permute.xlu0 0
        %1239 = vperm.xlu0 %1238, %v1189
        %v1240 = vpop.permute.xlu0 %1239
        %1243 = vset.pattern.permute.xlu0 0
        %1244 = vperm.xlu0 %1243, %v1190
        %v1245 = vpop.permute.xlu0 %1244
        %1248 = vset.pattern.permute.xlu0 0
        %1249 = vperm.xlu0 %1248, %v1191
        %v1250 = vpop.permute.xlu0 %1249
        %1253 = vset.pattern.permute.xlu0 0
        %1254 = vperm.xlu0 %1253, %v1192
        %v1255 = vpop.permute.xlu0 %1254
        %1258 = vset.pattern.permute.xlu0 0
        %1259 = vperm.xlu0 %1258, %v1193
        %v1260 = vpop.permute.xlu0 %1259
        %1263 = vset.pattern.permute.xlu0 0
        %1264 = vperm.xlu0 %1263, %v1194
        %v1265 = vpop.permute.xlu0 %1264
        %1268 = vset.pattern.permute.xlu0 0
        %1269 = vperm.xlu0 %1268, %v1195
        %v1270 = vpop.permute.xlu0 %1269
        %1273 = vset.pattern.permute.xlu0 0
        %1274 = vperm.xlu0 %1273, %v1196
        %v1275 = vpop.permute.xlu0 %1274
        %1278 = vset.pattern.permute.xlu0 0
        %1279 = vperm.xlu0 %1278, %v1197
        %v1280 = vpop.permute.xlu0 %1279
        %1283 = vset.pattern.permute.xlu0 0
        %1284 = vperm.xlu0 %1283, %v1198
        %v1285 = vpop.permute.xlu0 %1284
        %1288 = vset.pattern.permute.xlu0 0
        %1289 = vperm.xlu0 %1288, %v1199
        %v1290 = vpop.permute.xlu0 %1289
        %1293 = vset.pattern.permute.xlu0 0
        %1294 = vperm.xlu0 %1293, %v1200
        %v1295 = vpop.permute.xlu0 %1294
        %1298 = vset.pattern.permute.xlu0 0
        %1299 = vperm.xlu0 %1298, %v1201
        %v1300 = vpop.permute.xlu0 %1299
        %1303 = vset.pattern.permute.xlu0 0
        %1304 = vperm.xlu0 %1303, %v1202
        %v1305 = vpop.permute.xlu0 %1304
        %1308 = vset.pattern.permute.xlu0 0
        %1309 = vperm.xlu0 %1308, %v1203
        %v1310 = vpop.permute.xlu0 %1309
        %1313 = vset.pattern.permute.xlu0 0
        %1314 = vperm.xlu0 %1313, %v1204
        %v1315 = vpop.permute.xlu0 %1314
        %1318 = vset.pattern.permute.xlu0 0
        %1319 = vperm.xlu0 %1318, %v1205
        %v1320 = vpop.permute.xlu0 %1319
        %1323 = vset.pattern.permute.xlu0 0
        %1324 = vperm.xlu0 %1323, %v1206
        %v1325 = vpop.permute.xlu0 %1324
        %1328 = vset.pattern.permute.xlu0 0
        %1329 = vperm.xlu0 %1328, %v1207
        %v1330 = vpop.permute.xlu0 %1329
        %1333 = vset.pattern.permute.xlu0 0
        %1334 = vperm.xlu0 %1333, %v1208
        %v1335 = vpop.permute.xlu0 %1334
        %1338 = vset.pattern.permute.xlu0 0
        %1339 = vperm.xlu0 %1338, %v1209
        %v1340 = vpop.permute.xlu0 %1339
        %1343 = vset.pattern.permute.xlu0 0
        %1344 = vperm.xlu0 %1343, %v1210
        %v1345 = vpop.permute.xlu0 %1344
        %1348 = vset.pattern.permute.xlu0 0
        %1349 = vperm.xlu0 %1348, %v1211
        %v1350 = vpop.permute.xlu0 %1349
        %1353 = vset.pattern.permute.xlu0 0
        %1354 = vperm.xlu0 %1353, %v1212
        %v1355 = vpop.permute.xlu0 %1354
        %1358 = vset.pattern.permute.xlu0 0
        %1359 = vperm.xlu0 %1358, %v1213
        %v1360 = vpop.permute.xlu0 %1359
        %1363 = vset.pattern.permute.xlu0 0
        %1364 = vperm.xlu0 %1363, %v1214
        %v1365 = vpop.permute.xlu0 %1364
        %1368 = vset.pattern.permute.xlu0 0
        %1369 = vperm.xlu0 %1368, %v1215
        %v1370 = vpop.permute.xlu0 %1369
        %1373 = vset.pattern.permute.xlu0 0
        %1374 = vperm.xlu0 %1373, %v1216
        %v1375 = vpop.permute.xlu0 %1374
        %v1377 = vmul.f32 %v1153, %v1220
        %v1378 = vmul.f32 %v1154, %v1225
        %v1379 = vmul.f32 %v1155, %v1230
        %v1380 = vmul.f32 %v1156, %v1235
        %v1381 = vmul.f32 %v1157, %v1240
        %v1382 = vmul.f32 %v1158, %v1245
        %v1383 = vmul.f32 %v1159, %v1250
        %v1384 = vmul.f32 %v1160, %v1255
        %v1385 = vmul.f32 %v1161, %v1260
        %v1386 = vmul.f32 %v1162, %v1265
        %v1387 = vmul.f32 %v1163, %v1270
        %v1388 = vmul.f32 %v1164, %v1275
        %v1389 = vmul.f32 %v1165, %v1280
        %v1390 = vmul.f32 %v1166, %v1285
        %v1391 = vmul.f32 %v1167, %v1290
        %v1392 = vmul.f32 %v1168, %v1295
        %v1393 = vmul.f32 %v1169, %v1300
        %v1394 = vmul.f32 %v1170, %v1305
        %v1395 = vmul.f32 %v1171, %v1310
        %v1396 = vmul.f32 %v1172, %v1315
        %v1397 = vmul.f32 %v1173, %v1320
        %v1398 = vmul.f32 %v1174, %v1325
        %v1399 = vmul.f32 %v1175, %v1330
        %v1400 = vmul.f32 %v1176, %v1335
        %v1401 = vmul.f32 %v1177, %v1340
        %v1402 = vmul.f32 %v1178, %v1345
        %v1403 = vmul.f32 %v1179, %v1350
        %v1404 = vmul.f32 %v1180, %v1355
        %v1405 = vmul.f32 %v1181, %v1360
        %v1406 = vmul.f32 %v1182, %v1365
        %v1407 = vmul.f32 %v1183, %v1370
        %v1408 = vmul.f32 %v1184, %v1375
        %v1409 = vpack.c.bf16 %v1378, %v1377
        %v1410 = vpack.c.bf16 %v1380, %v1379
        %v1411 = vpack.c.bf16 %v1382, %v1381
        %v1412 = vpack.c.bf16 %v1384, %v1383
        %v1413 = vpack.c.bf16 %v1386, %v1385
        %v1414 = vpack.c.bf16 %v1388, %v1387
        %v1415 = vpack.c.bf16 %v1390, %v1389
        %v1416 = vpack.c.bf16 %v1392, %v1391
        %v1417 = vpack.c.bf16 %v1394, %v1393
        %v1418 = vpack.c.bf16 %v1396, %v1395
        %v1419 = vpack.c.bf16 %v1398, %v1397
        %v1420 = vpack.c.bf16 %v1400, %v1399
        %v1421 = vpack.c.bf16 %v1402, %v1401
        %v1422 = vpack.c.bf16 %v1404, %v1403
        %v1423 = vpack.c.bf16 %v1406, %v1405
        %v1424 = vpack.c.bf16 %v1408, %v1407
        %v1425 = vld [vmem:[%s5] sm:$0xf]
        %v1426 = vld [vmem:[%s5 + $0x4] sm:$0xf]
        %v1427 = vld [vmem:[%s5 + $0x8] sm:$0xf]
        %v1428 = vld [vmem:[%s5 + $0xc] sm:$0xf]
        %v1433 = vunpack.c.l.b16 %v1425
        %v1434 = vunpack.c.l.b16 %v1426
        %v1435 = vunpack.c.l.b16 %v1427
        %v1436 = vunpack.c.l.b16 %v1428
        %v1437 = vpack.c.b16 %v1434, %v1433
        %v1438 = vpack.c.b16 %v1436, %v1435
        %v1442 = vsel %vm401, %v1409, 0
        %v1445 = vsel %vm401, %v1410, 0
        %v1448 = vsel %vm401, %v1411, 0
        %v1451 = vsel %vm401, %v1412, 0
        %v1454 = vsel %vm401, %v1413, 0
        %v1457 = vsel %vm401, %v1414, 0
        %v1460 = vsel %vm401, %v1415, 0
        %v1463 = vsel %vm401, %v1416, 0
        %v1466 = vsel %vm401, %v1417, 0
        %v1469 = vsel %vm401, %v1418, 0
        %v1472 = vsel %vm401, %v1419, 0
        %v1475 = vsel %vm401, %v1420, 0
        %v1478 = vsel %vm401, %v1421, 0
        %v1481 = vsel %vm401, %v1422, 0
        %v1484 = vsel %vm401, %v1423, 0
        %v1487 = vsel %vm401, %v1424, 0
        %1489 = vmatpush.bf16.msra.mxu0 0
        %1490 = vmatpush.bf16.msra.mxu0 0
        %1491 = vmatpush.bf16.msra.mxu0 0
        %1492 = vmatpush.bf16.msra.mxu0 0
        %1493 = vmatpush.bf16.msra.mxu0 0
        %1494 = vmatpush.bf16.msra.mxu0 0
        %1495 = vmatpush.bf16.msra.mxu0 %v1438
        %1496 = vmatpush.bf16.msra.mxu0 %v1437
        %1497 = vmatmul.bf16.gmra.mxu0 %v1442
        %v1498 = vpop.f32.mrf.mxu0
        %v1499 = vadd.f32 0.0, %v1498
        %v1500 = vpop.f32.mrf.mxu0
        %v1501 = vadd.f32 0.0, %v1500
        %1502 = vmatmul.bf16.gmra.mxu0 %v1445
        %v1503 = vpop.f32.mrf.mxu0
        %v1504 = vadd.f32 0.0, %v1503
        %v1505 = vpop.f32.mrf.mxu0
        %v1506 = vadd.f32 0.0, %v1505
        %1507 = vmatmul.bf16.gmra.mxu0 %v1448
        %v1508 = vpop.f32.mrf.mxu0
        %v1509 = vadd.f32 0.0, %v1508
        %v1510 = vpop.f32.mrf.mxu0
        %v1511 = vadd.f32 0.0, %v1510
        %1512 = vmatmul.bf16.gmra.mxu0 %v1451
        %v1513 = vpop.f32.mrf.mxu0
        %v1514 = vadd.f32 0.0, %v1513
        %v1515 = vpop.f32.mrf.mxu0
        %v1516 = vadd.f32 0.0, %v1515
        %1517 = vmatmul.bf16.gmra.mxu0 %v1454
        %v1518 = vpop.f32.mrf.mxu0
        %v1519 = vadd.f32 0.0, %v1518
        %v1520 = vpop.f32.mrf.mxu0
        %v1521 = vadd.f32 0.0, %v1520
        %1522 = vmatmul.bf16.gmra.mxu0 %v1457
        %v1523 = vpop.f32.mrf.mxu0
        %v1524 = vadd.f32 0.0, %v1523
        %v1525 = vpop.f32.mrf.mxu0
        %v1526 = vadd.f32 0.0, %v1525
        %1527 = vmatmul.bf16.gmra.mxu0 %v1460
        %v1528 = vpop.f32.mrf.mxu0
        %v1529 = vadd.f32 0.0, %v1528
        %v1530 = vpop.f32.mrf.mxu0
        %v1531 = vadd.f32 0.0, %v1530
        %1532 = vmatmul.bf16.gmra.mxu0 %v1463
        %v1533 = vpop.f32.mrf.mxu0
        %v1534 = vadd.f32 0.0, %v1533
        %v1535 = vpop.f32.mrf.mxu0
        %v1536 = vadd.f32 0.0, %v1535
        %1537 = vmatmul.bf16.gmra.mxu0 %v1466
        %v1538 = vpop.f32.mrf.mxu0
        %v1539 = vadd.f32 0.0, %v1538
        %v1540 = vpop.f32.mrf.mxu0
        %v1541 = vadd.f32 0.0, %v1540
        %1542 = vmatmul.bf16.gmra.mxu0 %v1469
        %v1543 = vpop.f32.mrf.mxu0
        %v1544 = vadd.f32 0.0, %v1543
        %v1545 = vpop.f32.mrf.mxu0
        %v1546 = vadd.f32 0.0, %v1545
        %1547 = vmatmul.bf16.gmra.mxu0 %v1472
        %v1548 = vpop.f32.mrf.mxu0
        %v1549 = vadd.f32 0.0, %v1548
        %v1550 = vpop.f32.mrf.mxu0
        %v1551 = vadd.f32 0.0, %v1550
        %1552 = vmatmul.bf16.gmra.mxu0 %v1475
        %v1553 = vpop.f32.mrf.mxu0
        %v1554 = vadd.f32 0.0, %v1553
        %v1555 = vpop.f32.mrf.mxu0
        %v1556 = vadd.f32 0.0, %v1555
        %1557 = vmatmul.bf16.gmra.mxu0 %v1478
        %v1558 = vpop.f32.mrf.mxu0
        %v1559 = vadd.f32 0.0, %v1558
        %v1560 = vpop.f32.mrf.mxu0
        %v1561 = vadd.f32 0.0, %v1560
        %1562 = vmatmul.bf16.gmra.mxu0 %v1481
        %v1563 = vpop.f32.mrf.mxu0
        %v1564 = vadd.f32 0.0, %v1563
        %v1565 = vpop.f32.mrf.mxu0
        %v1566 = vadd.f32 0.0, %v1565
        %1567 = vmatmul.bf16.gmra.mxu0 %v1484
        %v1568 = vpop.f32.mrf.mxu0
        %v1569 = vadd.f32 0.0, %v1568
        %v1570 = vpop.f32.mrf.mxu0
        %v1571 = vadd.f32 0.0, %v1570
        %1572 = vmatmul.bf16.gmra.mxu0 %v1487
        %v1573 = vpop.f32.mrf.mxu0
        %v1574 = vadd.f32 0.0, %v1573
        %v1575 = vpop.f32.mrf.mxu0
        %v1576 = vadd.f32 0.0, %v1575
        %1577 = vdwg.mxu0
        %v1578 = vpack.c.bf16 %v1499, %v1499
        %v1579 = vpack.c.bf16 %v1501, %v1501
        %v1580 = vpack.c.bf16 %v1504, %v1504
        %v1581 = vpack.c.bf16 %v1506, %v1506
        %v1582 = vpack.c.bf16 %v1509, %v1509
        %v1583 = vpack.c.bf16 %v1511, %v1511
        %v1584 = vpack.c.bf16 %v1514, %v1514
        %v1585 = vpack.c.bf16 %v1516, %v1516
        %v1586 = vpack.c.bf16 %v1519, %v1519
        %v1587 = vpack.c.bf16 %v1521, %v1521
        %v1588 = vpack.c.bf16 %v1524, %v1524
        %v1589 = vpack.c.bf16 %v1526, %v1526
        %v1590 = vpack.c.bf16 %v1529, %v1529
        %v1591 = vpack.c.bf16 %v1531, %v1531
        %v1592 = vpack.c.bf16 %v1534, %v1534
        %v1593 = vpack.c.bf16 %v1536, %v1536
        %v1594 = vpack.c.bf16 %v1539, %v1539
        %v1595 = vpack.c.bf16 %v1541, %v1541
        %v1596 = vpack.c.bf16 %v1544, %v1544
        %v1597 = vpack.c.bf16 %v1546, %v1546
        %v1598 = vpack.c.bf16 %v1549, %v1549
        %v1599 = vpack.c.bf16 %v1551, %v1551
        %v1600 = vpack.c.bf16 %v1554, %v1554
        %v1601 = vpack.c.bf16 %v1556, %v1556
        %v1602 = vpack.c.bf16 %v1559, %v1559
        %v1603 = vpack.c.bf16 %v1561, %v1561
        %v1604 = vpack.c.bf16 %v1564, %v1564
        %v1605 = vpack.c.bf16 %v1566, %v1566
        %v1606 = vpack.c.bf16 %v1569, %v1569
        %v1607 = vpack.c.bf16 %v1571, %v1571
        %v1608 = vpack.c.bf16 %v1574, %v1574
        %v1609 = vpack.c.bf16 %v1576, %v1576
        %vm1610 = vcmask 257024
        %1611 = vst.msk [vmem:[%s366] sm:$0xf] %vm1610, %v1578
        %1612 = vst.msk [vmem:[%s366 + $0x4] sm:$0xf] %vm1610, %v1579
        %1613 = vst.msk [vmem:[%s366 + $0x8] sm:$0xf] %vm1610, %v1580
        %1614 = vst.msk [vmem:[%s366 + $0xc] sm:$0xf] %vm1610, %v1581
        %1615 = vst.msk [vmem:[%s366 + $0x10] sm:$0xf] %vm1610, %v1582
        %1616 = vst.msk [vmem:[%s366 + $0x14] sm:$0xf] %vm1610, %v1583
        %1617 = vst.msk [vmem:[%s366 + $0x18] sm:$0xf] %vm1610, %v1584
        %1618 = vst.msk [vmem:[%s366 + $0x1c] sm:$0xf] %vm1610, %v1585
        %1619 = vst.msk [vmem:[%s366 + $0x20] sm:$0xf] %vm1610, %v1586
        %1620 = vst.msk [vmem:[%s366 + $0x24] sm:$0xf] %vm1610, %v1587
        %1621 = vst.msk [vmem:[%s366 + $0x28] sm:$0xf] %vm1610, %v1588
        %1622 = vst.msk [vmem:[%s366 + $0x2c] sm:$0xf] %vm1610, %v1589
        %1623 = vst.msk [vmem:[%s366 + $0x30] sm:$0xf] %vm1610, %v1590
        %1624 = vst.msk [vmem:[%s366 + $0x34] sm:$0xf] %vm1610, %v1591
        %1625 = vst.msk [vmem:[%s366 + $0x38] sm:$0xf] %vm1610, %v1592
        %1626 = vst.msk [vmem:[%s366 + $0x3c] sm:$0xf] %vm1610, %v1593
        %1627 = vst.msk [vmem:[%s366 + $0x40] sm:$0xf] %vm1610, %v1594
        %1628 = vst.msk [vmem:[%s366 + $0x44] sm:$0xf] %vm1610, %v1595
        %1629 = vst.msk [vmem:[%s366 + $0x48] sm:$0xf] %vm1610, %v1596
        %1630 = vst.msk [vmem:[%s366 + $0x4c] sm:$0xf] %vm1610, %v1597
        %1631 = vst.msk [vmem:[%s366 + $0x50] sm:$0xf] %vm1610, %v1598
        %1632 = vst.msk [vmem:[%s366 + $0x54] sm:$0xf] %vm1610, %v1599
        %1633 = vst.msk [vmem:[%s366 + $0x58] sm:$0xf] %vm1610, %v1600
        %1634 = vst.msk [vmem:[%s366 + $0x5c] sm:$0xf] %vm1610, %v1601
        %1635 = vst.msk [vmem:[%s366 + $0x60] sm:$0xf] %vm1610, %v1602
        %1636 = vst.msk [vmem:[%s366 + $0x64] sm:$0xf] %vm1610, %v1603
        %1637 = vst.msk [vmem:[%s366 + $0x68] sm:$0xf] %vm1610, %v1604
        %1638 = vst.msk [vmem:[%s366 + $0x6c] sm:$0xf] %vm1610, %v1605
        %1639 = vst.msk [vmem:[%s366 + $0x70] sm:$0xf] %vm1610, %v1606
        %1640 = vst.msk [vmem:[%s366 + $0x74] sm:$0xf] %vm1610, %v1607
        %1641 = vst.msk [vmem:[%s366 + $0x78] sm:$0xf] %vm1610, %v1608
        %1642 = vst.msk [vmem:[%s366 + $0x7c] sm:$0xf] %vm1610, %v1609
        %v1643 = vld [vmem:[%s4] sm:$0xf]
        %v1644 = vld [vmem:[%s4 + $0x4] sm:$0xf]
        %v1645 = vld [vmem:[%s4 + $0x8] sm:$0xf]
        %v1646 = vld [vmem:[%s4 + $0xc] sm:$0xf]
        %v1651 = vunpack.c.l.b16 %v1643
        %v1652 = vunpack.c.l.b16 %v1644
        %v1653 = vunpack.c.l.b16 %v1645
        %v1654 = vunpack.c.l.b16 %v1646
        %v1655 = vpack.c.b16 %v1652, %v1651
        %v1656 = vpack.c.b16 %v1654, %v1653
        %v1658 = vsel %vm401, %v1655, 0
        %v1661 = vsel %vm401, %v1656, 0
        %1663 = vmatpush.bf16.xpose.msra.mxu0 %v1463
        %1664 = vmatpush.bf16.xpose.msra.mxu0 %v1460
        %1665 = vmatpush.bf16.xpose.msra.mxu0 %v1457
        %1666 = vmatpush.bf16.xpose.msra.mxu0 %v1454
        %1667 = vmatpush.bf16.xpose.msra.mxu0 %v1451
        %1668 = vmatpush.bf16.xpose.msra.mxu0 %v1448
        %1669 = vmatpush.bf16.xpose.msra.mxu0 %v1445
        %1670 = vmatpush.bf16.xpose.msra.mxu0 %v1442
        %1671 = vmatmul.bf16.gmra.mxu0 %v1658
        %v1672 = vpop.f32.mrf.mxu0
        %v1673 = vadd.f32 0.0, %v1672
        %v1674 = vpop.f32.mrf.mxu0
        %v1675 = vadd.f32 0.0, %v1674
        %1676 = vmatmul.bf16.gmra.mxu0 %v1661
        %v1677 = vpop.f32.mrf.mxu0
        %v1678 = vadd.f32 0.0, %v1677
        %v1679 = vpop.f32.mrf.mxu0
        %v1680 = vadd.f32 0.0, %v1679
        %1681 = vdwg.mxu0
        %1682 = vmatpush.bf16.xpose.msra.mxu0 %v1487
        %1683 = vmatpush.bf16.xpose.msra.mxu0 %v1484
        %1684 = vmatpush.bf16.xpose.msra.mxu0 %v1481
        %1685 = vmatpush.bf16.xpose.msra.mxu0 %v1478
        %1686 = vmatpush.bf16.xpose.msra.mxu0 %v1475
        %1687 = vmatpush.bf16.xpose.msra.mxu0 %v1472
        %1688 = vmatpush.bf16.xpose.msra.mxu0 %v1469
        %1689 = vmatpush.bf16.xpose.msra.mxu0 %v1466
        %1690 = vmatmul.bf16.gmra.mxu0 %v1658
        %v1691 = vpop.f32.mrf.mxu0
        %v1692 = vadd.f32 0.0, %v1691
        %v1693 = vpop.f32.mrf.mxu0
        %v1694 = vadd.f32 0.0, %v1693
        %1695 = vmatmul.bf16.gmra.mxu0 %v1661
        %v1696 = vpop.f32.mrf.mxu0
        %v1697 = vadd.f32 0.0, %v1696
        %v1698 = vpop.f32.mrf.mxu0
        %v1699 = vadd.f32 0.0, %v1698
        %1700 = vdwg.mxu0
        %v1701 = vpack.c.bf16 %v1692, %v1673
        %v1702 = vpack.c.bf16 %v1694, %v1675
        %v1703 = vpack.c.bf16 %v1697, %v1678
        %v1704 = vpack.c.bf16 %v1699, %v1680
        %1705 = vst [vmem:[%s325] sm:$0xff] %v1701
        %1706 = vst [vmem:[%s325 + $0x8] sm:$0xff] %v1702
        %1707 = vst [vmem:[%s325 + $0x10] sm:$0xff] %v1703
        %1708 = vst [vmem:[%s325 + $0x18] sm:$0xff] %v1704
        %s1709 = sand.u32 %s184, 1
        %s1710 = scalar_lea.sflag [#allocation3], %s1709
        %s1711 = sand.u32 %s184, 1
        %s1712 = smul.addr %s1711, 32
        %s1713 = scalar_lea.vmem [#allocation2], %s1712
        %s1714 = smul.u32 32, %s27
        %p1715 = scmp.lt.s32.totalorder %s26, 1
        %s1716 = scalar_select %p1715, %s26, 1
        %p1717 = scmp.lt.s32.totalorder %s1714, 31
        %s1718 = scalar_select %p1717, %s1714, 31
        %s1719 = smul.addr %s1716, 32
        %s1720 = sadd.s32 %s1718, %s1719
        %s1721 = smul.addr %s1720, 4
        %s1722 = scalar_lea.vmem %s7, %s1721
        // Predicated region
        $region45: #{tpu_custom_call.1} parent=43 // pred_check
          %p1723 = pneg %p194
        $region46: #{tpu_custom_call.1} parent=43 // pred_check_branch
          %1725 = sbr.rel (%p1723) target = $region48
        $region47: #{tpu_custom_call.1} parent=43 // pred_region
          %s1726 = smul.u32 2, %s27
          %1728 = vsyncadd %s1710, 0
          %s1729 = smul.addr %s26, 8
          %s1730 = sadd.s32 %s1726, %s1729
          %s1731 = smul.addr %s1730, 4
          %s1732 = scalar_lea.hbm %s6, %s1731
          %s1733 = sshll.u32 %s1713, 4
          %s1734 = int_to_ptr.vmem [resolvable:$true] %s1733
          %s1735 = sshll.u32 %s1732, 4
          %s1736 = int_to_ptr.hbm [resolvable:$true] %s1735
          %1741 = dma.vmem_to_hbm [thread:$0]  %s1734, 512, %s1736, %s1710, 128, 128, 8
        $region48: #{tpu_custom_call.1} parent=43 // pred_fallthru
          _
        // Predicated region
        $region49: #{tpu_custom_call.1} parent=43 // pred_check
          %p1742 = pneg %p222
        $region50: #{tpu_custom_call.1} parent=43 // pred_check_branch
          %1744 = sbr.rel (%p1742) target = $region52
        $region51: #{tpu_custom_call.1} parent=43 // pred_region
          %s1745 = smul.u32 32, %s27
        $region52: #{tpu_custom_call.1} parent=43 // pred_fallthru
          _
      $region44: #{tpu_custom_call.1} parent=5 // pred_fallthru
        _
      %p1746 = scmp.le.s32.totalorder 2, %s17
      // Predicated region
      $region53: #{tpu_custom_call.1} parent=5 // pred_check
        %p1747 = pneg %p1746
      $region54: #{tpu_custom_call.1} parent=5 // pred_check_branch
        %1749 = sbr.rel (%p1747) target = $region56
      $region55: #{tpu_custom_call.1} parent=5 // pred_region
        %s1750 = ssub.s32 %s17, 2
        // Predicated region
        $region57: #{tpu_custom_call.1} parent=55 // pred_check
          %p1751 = pneg %p200
        $region58: #{tpu_custom_call.1} parent=55 // pred_check_branch
          %1753 = sbr.rel (%p1751) target = $region60
        $region59: #{tpu_custom_call.1} parent=55 // pred_region
          %s1754 = sand.u32 %s185, 1
          %s1755 = scalar_lea.sflag [#allocation3], %s1754
          %s1756 = sand.u32 %s185, 1
          %s1757 = smul.addr %s1756, 32
          %s1758 = scalar_lea.vmem [#allocation2], %s1757
          %1760 = dma.done %s1755, 512
        $region60: #{tpu_custom_call.1} parent=55 // pred_fallthru
          _
        // Predicated region
        $region61: #{tpu_custom_call.1} parent=55 // pred_check
          %p1761 = pneg %p228
        $region62: #{tpu_custom_call.1} parent=55 // pred_check_branch
          %1763 = sbr.rel (%p1761) target = $region64
        $region63: #{tpu_custom_call.1} parent=55 // pred_region
          %s1764 = smul.u32 32, %s29
          %p1765 = scmp.lt.s32.totalorder %s28, 1
          %s1766 = scalar_select %p1765, %s28, 1
          %p1767 = scmp.lt.s32.totalorder %s1764, 31
          %s1768 = scalar_select %p1767, %s1764, 31
          %s1769 = smul.addr %s1766, 32
          %s1770 = sadd.s32 %s1768, %s1769
          %s1771 = smul.addr %s1770, 4
          %s1772 = scalar_lea.vmem %s7, %s1771
        $region64: #{tpu_custom_call.1} parent=55 // pred_fallthru
          _
      $region56: #{tpu_custom_call.1} parent=5 // pred_fallthru
        _
    $region6: #{tpu_custom_call.1} parent=1 // loop_footer
      %s21 = sadd.s32 1, %s17
    $region7: #{tpu_custom_call.1} parent=1 // loop_footer_branch
      %16 = sbr.rel target = $region3
    $region8: #{tpu_custom_call.1} parent=1 // loop_exit
      _
    %1773 = vsyncpa [#allocation3], 1
    %s1774 = scalar_lea.sflag [#allocation3], 1
    %1775 = vsyncpa %s1774, 1

</llo_original>
